<compile_context>
chip_gen: v7x
topology: tpu7x:2x2x1
jax: 0.10.0
libtpu: 0.0.40
codegen_flags: <defaults>
</compile_context>

<pallas_src>
import functools
import math

import jax
import jax.numpy as jnp
from jax.experimental import pallas as pl
from jax.experimental.pallas import tpu as pltpu


# ----------------------------- Kernel 1: fused dual projections --------------------
def dual_proj_kernel(q_ref, k_ref, u_ref,
                     wlq_ref, blq_ref, wuq_ref, buq_ref, wpq_ref,
                     wlk_ref, blk_ref, wuk_ref, buk_ref, wpk_ref,
                     bp_ref, oq_ref, ok_ref, *, scale):
    """One row tile; both DualAttention param sets.

    q_ref/k_ref/u_ref : (TM, D) f32 row tiles (cast to bf16 in-kernel for MXU)
    w*_ref            : (D, D)  f32 untransposed PyTorch weights (grid-invariant)
    b*_ref            : (1, D)  f32 biases / W_P row vectors
    bp_ref            : (2,)    f32 SMEM table of b_P (q set, k set)
    oq_ref/ok_ref     : (TM, D) bf16 projections (1/sqrt(d_k) folded into oq)
    """
    q = q_ref[...].astype(jnp.bfloat16)
    k = k_ref[...].astype(jnp.bfloat16)
    u = u_ref[...].astype(jnp.bfloat16)

    # x @ W.T without pre-transposing W in the wrapper.
    dims = (((1,), (1,)), ((), ()))

    def dual(x, wl, bl, wu, bu, wp, bp):
        xin = jax.lax.dot_general(x, wl[...].astype(jnp.bfloat16), dims,
                                  preferred_element_type=jnp.float32) + bl[...]
        uin = jax.lax.dot_general(u, wu[...].astype(jnp.bfloat16), dims,
                                  preferred_element_type=jnp.float32) + bu[...]
        # P(xin) + P(uin) == (xin + uin) @ W_P.T + 2*b_P  -> VPU lane reduce.
        gate = jnp.sum((xin + uin) * wp[...], axis=-1, keepdims=True) + 2.0 * bp
        para = jax.nn.sigmoid(gate)
        return (1.0 - para) * xin + para * uin

    out_q = dual(q, wlq_ref, blq_ref, wuq_ref, buq_ref, wpq_ref, bp_ref[0])
    out_k = dual(k, wlk_ref, blk_ref, wuk_ref, buk_ref, wpk_ref, bp_ref[1])

    oq_ref[...] = (out_q * scale).astype(oq_ref.dtype)   # fold 1/sqrt(d_k) into q
    ok_ref[...] = out_k.astype(ok_ref.dtype)


# ----------------------------- Kernel 2: masked softmax attention ------------------
def attention_kernel(q_ref, k_ref, mask_ref, out_ref, *, h, d_k):
    """One (batch, query-tile) step, all h heads.

    q_ref   : (1, TQ, D) bf16   (scale already folded in by kernel 1)
    k_ref   : (1, L, D)  bf16
    mask_ref: (1, TQ, L) bf16   (1. == masked)
    out_ref : (1, h, TQ, L) f32
    """
    q = q_ref[0]                                   # (TQ, D) bf16
    k = k_ref[0]                                   # (L, D)  bf16
    masked = mask_ref[0] != 0.0                    # (TQ, L) bool
    neg = jnp.float32(-10000.0)

    for hh in range(h):                            # h is small & static
        lo = hh * d_k
        s = jax.lax.dot_general(q[:, lo:lo + d_k], k[:, lo:lo + d_k],
                                (((1,), (1,)), ((), ())),
                                preferred_element_type=jnp.float32)   # (TQ, L) f32
        s = jnp.where(masked, neg, s)              # exact masked_fill semantics
        m = jnp.max(s, axis=-1, keepdims=True)
        e = jnp.exp(s - m)
        denom = jnp.sum(e, axis=-1, keepdims=True)
        # Per-head store (L is the lane dim of the output) ends this head's live
        # range, keeping the working set to a single (TQ, L) f32 tile.
        out_ref[0, hh, :, :] = (e * pl.reciprocal(denom, approx=True)).astype(out_ref.dtype)


# ----------------------------- Tile / VMEM budgeting ---------------------------------
def _vmem_capacity_bytes():
    try:
        info = pltpu.get_tpu_info()
        cap = getattr(info, "vmem_capacity_bytes", None)
        if cap:
            return int(cap)
    except Exception:
        pass
    return 64 * 1024 * 1024          # conservative fallback (v7x per-core VMEM)


def _pick_tm(R, D, budget):
    """Row tile for kernel 1 (multiple of 128 where possible, >= ~4 grid steps)."""
    fixed = 2 * (4 * D * D * 4)                         # four f32 (D,D) weights, 2-buffered
    per_row = 2 * (3 * 4 * D + 2 * 2 * D) + 16 * D      # f32 q/k/u + bf16 outs (2-buf) + temps
    tm = (budget - fixed) // max(per_row, 1)
    tm = int(min(tm, R, 2048))
    if tm >= R:
        return R
    if R >= 4 * 128:
        tm = min(tm, max(128, R // 4))                  # keep a few steps for pipelining
    if tm >= 128:
        return (tm // 128) * 128
    return max(8, (tm // 8) * 8)


def _pick_tq(L, D, h, budget):
    """Query tile for kernel 2 (keeps the (1,h,TQ,L) f32 out block VMEM-safe)."""
    if L <= 128:
        return L
    fixed = 2 * (2 * L * D)                             # bf16 K block, 2-buffered
    per_tq = 2 * (2 * D + 2 * L + 4 * h * L) + 12 * L   # q/mask/out blocks (2-buf) + f32 temps
    tq = (budget - fixed) // max(per_tq, 1)
    tq = int(min(tq, L))
    if tq >= L:
        return L
    if tq >= 128:
        return (tq // 128) * 128
    return max(8, (tq // 8) * 8)


# ----------------------------- Wrapper ------------------------------------------------
def multi_head_dual_attention(query, key, u_input, mask, params, h):
    """Pallas implementation of MultiHeadDualAttention.forward (returns attn probs)."""
    B, L, D = query.shape
    assert D % h == 0
    d_k = D // h
    R = B * L

    cap = _vmem_capacity_bytes()
    vmem_limit = int(cap * 0.75)
    budget = int(cap * 0.55)          # planning budget (headroom for compiler scratch)

    pq, pk = params["q"], params["k"]
    row = lambda v: v.reshape(1, D)
    scale = float(1.0 / math.sqrt(d_k))

    # ---------------- Kernel 1: both param sets, bf16 projections ----------------
    TM = _pick_tm(R, D, budget)
    n_row = pl.cdiv(R, TM)

    row_spec = pl.BlockSpec((TM, D), lambda i: (i, 0))
    const_w = pl.BlockSpec((D, D), lambda i: (0, 0))     # grid-invariant weights
    const_r = pl.BlockSpec((1, D), lambda i: (0, 0))     # biases / W_P rows

    proj_q, proj_k = pl.pallas_call(
        functools.partial(dual_proj_kernel, scale=scale),
        out_shape=(jax.ShapeDtypeStruct((R, D), jnp.bfloat16),
                   jax.ShapeDtypeStruct((R, D), jnp.bfloat16)),
        grid=(n_row,),
        in_specs=[
            row_spec, row_spec, row_spec,                          # query / key / u rows
            const_w, const_r, const_w, const_r, const_r,           # q param set
            const_w, const_r, const_w, const_r, const_r,           # k param set
            pl.BlockSpec(memory_space=pltpu.MemorySpace.SMEM),     # b_P scalar table
        ],
        out_specs=(row_spec, row_spec),
        compiler_params=pltpu.CompilerParams(
            dimension_semantics=("parallel",),
            vmem_limit_bytes=vmem_limit),
    )(query.reshape(R, D), key.reshape(R, D), u_input.reshape(R, D),
      pq["W_lin"], row(pq["b_lin"]), pq["W_U"], row(pq["b_U"]), pq["W_P"],
      pk["W_lin"], row(pk["b_lin"]), pk["W_U"], row(pk["b_U"]), pk["W_P"],
      jnp.concatenate([pq["b_P"], pk["b_P"]]))

    proj_q = proj_q.reshape(B, L, D)      # free (contiguous) reshapes, no HBM pass
    proj_k = proj_k.reshape(B, L, D)
    mask_b = mask.astype(jnp.bfloat16)    # half the int32 DMA bytes for the mask

    # ---------------- Kernel 2: TQ-tiled masked softmax attention ----------------
    TQ = _pick_tq(L, D, h, budget)
    n_q = pl.cdiv(L, TQ)

    attn = pl.pallas_call(
        functools.partial(attention_kernel, h=h, d_k=d_k),
        out_shape=jax.ShapeDtypeStruct((B, h, L, L), jnp.float32),
        grid=(B, n_q),
        in_specs=[
            pl.BlockSpec((1, TQ, D), lambda b, qi: (b, qi, 0)),   # q rows (bf16)
            pl.BlockSpec((1, L, D), lambda b, qi: (b, 0, 0)),     # full K rows (bf16)
            pl.BlockSpec((1, TQ, L), lambda b, qi: (b, qi, 0)),   # mask rows
        ],
        out_specs=pl.BlockSpec((1, h, TQ, L), lambda b, qi: (b, 0, qi, 0)),
        compiler_params=pltpu.CompilerParams(
            dimension_semantics=("parallel", "parallel"),
            vmem_limit_bytes=vmem_limit),
    )(proj_q, proj_k, mask_b)
    return attn


# ----------------------------- Pure-JAX reference (for verification) ---------------
def reference_forward(query, key, u_input, mask, params, h):
    B, L, D = query.shape
    d_k = D // h

    def dual(x, p):
        xin = x @ p["W_lin"].T + p["b_lin"]
        uin = u_input @ p["W_U"].T + p["b_U"]
        para = jax.nn.sigmoid((xin @ p["W_P"].T + p["b_P"]) +
                              (uin @ p["W_P"].T + p["b_P"]))
        return (1.0 - para) * xin + para * uin

    q = dual(query, params["q"]).reshape(B, L, h, d_k).transpose(0, 2, 1, 3)
    k = dual(key,   params["k"]).reshape(B, L, h, d_k).transpose(0, 2, 1, 3)
    scores = jnp.einsum('bhqd,bhkd->bhqk', q, k) / math.sqrt(d_k)
    scores = jnp.where(mask[:, None, :, :], -10000.0, scores)
    return jax.nn.softmax(scores, axis=-1)


# ----------------------------- Main --------------------------------------------------
def _init_dual_params(key, D):
    ks = jax.random.split(key, 6)
    s = 1.0 / math.sqrt(D)
    return {
        "W_lin": jax.random.uniform(ks[0], (D, D), jnp.float32, -s, s),
        "b_lin": jax.random.uniform(ks[1], (D,),   jnp.float32, -s, s),
        "W_U":   jax.random.uniform(ks[2], (D, D), jnp.float32, -s, s),
        "b_U":   jax.random.uniform(ks[3], (D,),   jnp.float32, -s, s),
        "W_P":   jax.random.uniform(ks[4], (1, D), jnp.float32, -s, s),
        "b_P":   jax.random.uniform(ks[5], (1,),   jnp.float32, -s, s),
    }


if __name__ == "__main__":
    B, L, D, H = 2, 8, 32, 4          # batch, seq, d_model, heads  (d_k = 8)

    root = jax.random.PRNGKey(0)
    k_q, k_k, k_u, k_m, k_pq, k_pk = jax.random.split(root, 6)

    query   = jax.random.normal(k_q, (B, L, D), jnp.float32)
    key_in  = jax.random.normal(k_k, (B, L, D), jnp.float32)
    u_input = jax.random.normal(k_u, (B, L, D), jnp.float32)
    mask    = jax.random.uniform(k_m, (B, L, L)) > 0.8        # bool mask

    params = {"q": _init_dual_params(k_pq, D), "k": _init_dual_params(k_pk, D)}

    fwd = jax.jit(multi_head_dual_attention, static_argnums=(5,))
    attn = jax.block_until_ready(fwd(query, key_in, u_input, mask, params, H))

    ref = reference_forward(query, key_in, u_input, mask, params, H)
    assert attn.shape == (B, H, L, L)
    # bf16 MXU path + EUP approx reciprocal -> compare with a loose tolerance.
    assert jnp.allclose(attn, ref, atol=2e-2, rtol=2e-2), "mismatch vs JAX reference"

    print("KERNEL_OK")
</pallas_src>

<mosaic_0001>
module attributes {stable_mosaic.version = 11 : i64} {
  func.func @dual_proj_kernel(%arg0: i32, %arg1: memref<16x32xf32, #tpu.memory_space<vmem>>, %arg2: memref<16x32xf32, #tpu.memory_space<vmem>>, %arg3: memref<16x32xf32, #tpu.memory_space<vmem>>, %arg4: memref<32x32xf32, #tpu.memory_space<vmem>>, %arg5: memref<1x32xf32, #tpu.memory_space<vmem>>, %arg6: memref<32x32xf32, #tpu.memory_space<vmem>>, %arg7: memref<1x32xf32, #tpu.memory_space<vmem>>, %arg8: memref<1x32xf32, #tpu.memory_space<vmem>>, %arg9: memref<32x32xf32, #tpu.memory_space<vmem>>, %arg10: memref<1x32xf32, #tpu.memory_space<vmem>>, %arg11: memref<32x32xf32, #tpu.memory_space<vmem>>, %arg12: memref<1x32xf32, #tpu.memory_space<vmem>>, %arg13: memref<1x32xf32, #tpu.memory_space<vmem>>, %arg14: memref<2xf32, #tpu.memory_space<smem>>, %arg15: memref<16x32xbf16, #tpu.memory_space<vmem>>, %arg16: memref<16x32xbf16, #tpu.memory_space<vmem>>) attributes {dimension_semantics = [#tpu.dimension_semantics<parallel>], iteration_bounds = array<i64: 1>, scalar_prefetch = 0 : i64, scratch_operands = 0 : i64, tpu.core_type = #tpu.core_type<tc>, window_params = [{transform_indices = @transform_0, window_bounds = array<i64: 16, 32>}, {transform_indices = @transform_1, window_bounds = array<i64: 16, 32>}, {transform_indices = @transform_2, window_bounds = array<i64: 16, 32>}, {pipeline_mode = #tpu.pipeline_mode<synchronous>, transform_indices = @transform_3, window_bounds = array<i64: 32, 32>}, {pipeline_mode = #tpu.pipeline_mode<synchronous>, transform_indices = @transform_4, window_bounds = array<i64: 1, 32>}, {pipeline_mode = #tpu.pipeline_mode<synchronous>, transform_indices = @transform_5, window_bounds = array<i64: 32, 32>}, {pipeline_mode = #tpu.pipeline_mode<synchronous>, transform_indices = @transform_6, window_bounds = array<i64: 1, 32>}, {pipeline_mode = #tpu.pipeline_mode<synchronous>, transform_indices = @transform_7, window_bounds = array<i64: 1, 32>}, {pipeline_mode = #tpu.pipeline_mode<synchronous>, transform_indices = @transform_8, window_bounds = array<i64: 32, 32>}, {pipeline_mode = #tpu.pipeline_mode<synchronous>, transform_indices = @transform_9, window_bounds = array<i64: 1, 32>}, {pipeline_mode = #tpu.pipeline_mode<synchronous>, transform_indices = @transform_10, window_bounds = array<i64: 32, 32>}, {pipeline_mode = #tpu.pipeline_mode<synchronous>, transform_indices = @transform_11, window_bounds = array<i64: 1, 32>}, {pipeline_mode = #tpu.pipeline_mode<synchronous>, transform_indices = @transform_12, window_bounds = array<i64: 1, 32>}, {transform_indices = @transform_13, window_bounds = array<i64: 2>}, {transform_indices = @transform_14, window_bounds = array<i64: 16, 32>}, {transform_indices = @transform_15, window_bounds = array<i64: 16, 32>}]} {
    %c0 = arith.constant 0 : index
    %c0_0 = arith.constant 0 : index
    %0 = vector.load %arg1[%c0, %c0_0] : memref<16x32xf32, #tpu.memory_space<vmem>>, vector<16x32xf32>
    %1 = arith.truncf %0 : vector<16x32xf32> to vector<16x32xbf16>
    %c0_1 = arith.constant 0 : index
    %c0_2 = arith.constant 0 : index
    %2 = vector.load %arg2[%c0_1, %c0_2] : memref<16x32xf32, #tpu.memory_space<vmem>>, vector<16x32xf32>
    %3 = arith.truncf %2 : vector<16x32xf32> to vector<16x32xbf16>
    %c0_3 = arith.constant 0 : index
    %c0_4 = arith.constant 0 : index
    %4 = vector.load %arg3[%c0_3, %c0_4] : memref<16x32xf32, #tpu.memory_space<vmem>>, vector<16x32xf32>
    %5 = arith.truncf %4 : vector<16x32xf32> to vector<16x32xbf16>
    %c0_5 = arith.constant 0 : index
    %6 = memref.load %arg14[%c0_5] : memref<2xf32, #tpu.memory_space<smem>>
    %c0_6 = arith.constant 0 : index
    %c0_7 = arith.constant 0 : index
    %7 = vector.load %arg4[%c0_6, %c0_7] : memref<32x32xf32, #tpu.memory_space<vmem>>, vector<32x32xf32>
    %8 = arith.truncf %7 : vector<32x32xf32> to vector<32x32xbf16>
    %cst = arith.constant dense<0.000000e+00> : vector<16x32xf32>
    %9 = tpu.matmul %1, %8, %cst {dimension_numbers = #tpu.dot_dimension_numbers<[1], [1], [0], [0], [0, 0, 1, 0], [], []>} : vector<16x32xbf16>, vector<32x32xbf16>, vector<16x32xf32> -> vector<16x32xf32>
    %c0_8 = arith.constant 0 : index
    %c0_9 = arith.constant 0 : index
    %10 = vector.load %arg5[%c0_8, %c0_9] : memref<1x32xf32, #tpu.memory_space<vmem>>, vector<1x32xf32>
    %11 = vector.broadcast %10 : vector<1x32xf32> to vector<16x32xf32>
    %12 = arith.addf %9, %11 : vector<16x32xf32>
    %c0_10 = arith.constant 0 : index
    %c0_11 = arith.constant 0 : index
    %13 = vector.load %arg6[%c0_10, %c0_11] : memref<32x32xf32, #tpu.memory_space<vmem>>, vector<32x32xf32>
    %14 = arith.truncf %13 : vector<32x32xf32> to vector<32x32xbf16>
    %cst_12 = arith.constant dense<0.000000e+00> : vector<16x32xf32>
    %15 = tpu.matmul %5, %14, %cst_12 {dimension_numbers = #tpu.dot_dimension_numbers<[1], [1], [0], [0], [0, 0, 1, 0], [], []>} : vector<16x32xbf16>, vector<32x32xbf16>, vector<16x32xf32> -> vector<16x32xf32>
    %c0_13 = arith.constant 0 : index
    %c0_14 = arith.constant 0 : index
    %16 = vector.load %arg7[%c0_13, %c0_14] : memref<1x32xf32, #tpu.memory_space<vmem>>, vector<1x32xf32>
    %17 = vector.broadcast %16 : vector<1x32xf32> to vector<16x32xf32>
    %18 = arith.addf %15, %17 : vector<16x32xf32>
    %19 = arith.addf %12, %18 : vector<16x32xf32>
    %c0_15 = arith.constant 0 : index
    %c0_16 = arith.constant 0 : index
    %20 = vector.load %arg8[%c0_15, %c0_16] : memref<1x32xf32, #tpu.memory_space<vmem>>, vector<1x32xf32>
    %21 = vector.broadcast %20 : vector<1x32xf32> to vector<16x32xf32>
    %22 = arith.mulf %19, %21 : vector<16x32xf32>
    %cst_17 = arith.constant dense<0.000000e+00> : vector<16xf32>
    %23 = vector.multi_reduction <add>, %22, %cst_17 [1] : vector<16x32xf32> to vector<16xf32>
    %24 = vector.shape_cast %23 : vector<16xf32> to vector<16x1xf32>
    %cst_18 = arith.constant 2.000000e+00 : f32
    %25 = arith.mulf %cst_18, %6 : f32
    %26 = vector.broadcast %25 : f32 to vector<16x1xf32>
    %27 = arith.addf %24, %26 : vector<16x1xf32>
    %28 = arith.negf %27 : vector<16x1xf32>
    %29 = math.exp %28 : vector<16x1xf32>
    %cst_19 = arith.constant 1.000000e+00 : f32
    %30 = vector.broadcast %cst_19 : f32 to vector<16x1xf32>
    %31 = arith.addf %30, %29 : vector<16x1xf32>
    %32 = arith.divf %30, %31 : vector<16x1xf32>
    %cst_20 = arith.constant 1.000000e+00 : f32
    %33 = vector.broadcast %cst_20 : f32 to vector<16x1xf32>
    %34 = arith.subf %33, %32 : vector<16x1xf32>
    %35 = vector.broadcast %34 : vector<16x1xf32> to vector<16x32xf32>
    %36 = arith.mulf %35, %12 : vector<16x32xf32>
    %37 = vector.broadcast %32 : vector<16x1xf32> to vector<16x32xf32>
    %38 = arith.mulf %37, %18 : vector<16x32xf32>
    %39 = arith.addf %36, %38 : vector<16x32xf32>
    %c1 = arith.constant 1 : index
    %40 = memref.load %arg14[%c1] : memref<2xf32, #tpu.memory_space<smem>>
    %c0_21 = arith.constant 0 : index
    %c0_22 = arith.constant 0 : index
    %41 = vector.load %arg9[%c0_21, %c0_22] : memref<32x32xf32, #tpu.memory_space<vmem>>, vector<32x32xf32>
    %42 = arith.truncf %41 : vector<32x32xf32> to vector<32x32xbf16>
    %cst_23 = arith.constant dense<0.000000e+00> : vector<16x32xf32>
    %43 = tpu.matmul %3, %42, %cst_23 {dimension_numbers = #tpu.dot_dimension_numbers<[1], [1], [0], [0], [0, 0, 1, 0], [], []>} : vector<16x32xbf16>, vector<32x32xbf16>, vector<16x32xf32> -> vector<16x32xf32>
    %c0_24 = arith.constant 0 : index
    %c0_25 = arith.constant 0 : index
    %44 = vector.load %arg10[%c0_24, %c0_25] : memref<1x32xf32, #tpu.memory_space<vmem>>, vector<1x32xf32>
    %45 = vector.broadcast %44 : vector<1x32xf32> to vector<16x32xf32>
    %46 = arith.addf %43, %45 : vector<16x32xf32>
    %c0_26 = arith.constant 0 : index
    %c0_27 = arith.constant 0 : index
    %47 = vector.load %arg11[%c0_26, %c0_27] : memref<32x32xf32, #tpu.memory_space<vmem>>, vector<32x32xf32>
    %48 = arith.truncf %47 : vector<32x32xf32> to vector<32x32xbf16>
    %cst_28 = arith.constant dense<0.000000e+00> : vector<16x32xf32>
    %49 = tpu.matmul %5, %48, %cst_28 {dimension_numbers = #tpu.dot_dimension_numbers<[1], [1], [0], [0], [0, 0, 1, 0], [], []>} : vector<16x32xbf16>, vector<32x32xbf16>, vector<16x32xf32> -> vector<16x32xf32>
    %c0_29 = arith.constant 0 : index
    %c0_30 = arith.constant 0 : index
    %50 = vector.load %arg12[%c0_29, %c0_30] : memref<1x32xf32, #tpu.memory_space<vmem>>, vector<1x32xf32>
    %51 = vector.broadcast %50 : vector<1x32xf32> to vector<16x32xf32>
    %52 = arith.addf %49, %51 : vector<16x32xf32>
    %53 = arith.addf %46, %52 : vector<16x32xf32>
    %c0_31 = arith.constant 0 : index
    %c0_32 = arith.constant 0 : index
    %54 = vector.load %arg13[%c0_31, %c0_32] : memref<1x32xf32, #tpu.memory_space<vmem>>, vector<1x32xf32>
    %55 = vector.broadcast %54 : vector<1x32xf32> to vector<16x32xf32>
    %56 = arith.mulf %53, %55 : vector<16x32xf32>
    %cst_33 = arith.constant dense<0.000000e+00> : vector<16xf32>
    %57 = vector.multi_reduction <add>, %56, %cst_33 [1] : vector<16x32xf32> to vector<16xf32>
    %58 = vector.shape_cast %57 : vector<16xf32> to vector<16x1xf32>
    %cst_34 = arith.constant 2.000000e+00 : f32
    %59 = arith.mulf %cst_34, %40 : f32
    %60 = vector.broadcast %59 : f32 to vector<16x1xf32>
    %61 = arith.addf %58, %60 : vector<16x1xf32>
    %62 = arith.negf %61 : vector<16x1xf32>
    %63 = math.exp %62 : vector<16x1xf32>
    %cst_35 = arith.constant 1.000000e+00 : f32
    %64 = vector.broadcast %cst_35 : f32 to vector<16x1xf32>
    %65 = arith.addf %64, %63 : vector<16x1xf32>
    %66 = arith.divf %64, %65 : vector<16x1xf32>
    %cst_36 = arith.constant 1.000000e+00 : f32
    %67 = vector.broadcast %cst_36 : f32 to vector<16x1xf32>
    %68 = arith.subf %67, %66 : vector<16x1xf32>
    %69 = vector.broadcast %68 : vector<16x1xf32> to vector<16x32xf32>
    %70 = arith.mulf %69, %46 : vector<16x32xf32>
    %71 = vector.broadcast %66 : vector<16x1xf32> to vector<16x32xf32>
    %72 = arith.mulf %71, %52 : vector<16x32xf32>
    %73 = arith.addf %70, %72 : vector<16x32xf32>
    %cst_37 = arith.constant 0.353553385 : f32
    %74 = vector.broadcast %cst_37 : f32 to vector<16x32xf32>
    %75 = arith.mulf %39, %74 : vector<16x32xf32>
    %76 = arith.truncf %75 : vector<16x32xf32> to vector<16x32xbf16>
    %c0_38 = arith.constant 0 : index
    %c0_39 = arith.constant 0 : index
    %77 = vector.load %arg15[%c0_38, %c0_39] : memref<16x32xbf16, #tpu.memory_space<vmem>>, vector<16x32xbf16>
    tpu.vector_store %arg15[%c0_38, %c0_39], %76 {strides = array<i32>} : memref<16x32xbf16, #tpu.memory_space<vmem>>, vector<16x32xbf16>,
    %78 = arith.truncf %73 : vector<16x32xf32> to vector<16x32xbf16>
    %c0_40 = arith.constant 0 : index
    %c0_41 = arith.constant 0 : index
    %79 = vector.load %arg16[%c0_40, %c0_41] : memref<16x32xbf16, #tpu.memory_space<vmem>>, vector<16x32xbf16>
    tpu.vector_store %arg16[%c0_40, %c0_41], %78 {strides = array<i32>} : memref<16x32xbf16, #tpu.memory_space<vmem>>, vector<16x32xbf16>,
    return
  }
  func.func @transform_0(%arg0: i32) -> (i32, i32) {
    %c0_i32 = arith.constant 0 : i32
    %c0_i32_0 = arith.constant 0 : i32
    return %arg0, %c0_i32 : i32, i32
  }
  func.func @transform_1(%arg0: i32) -> (i32, i32) {
    %c0_i32 = arith.constant 0 : i32
    %c0_i32_0 = arith.constant 0 : i32
    return %arg0, %c0_i32 : i32, i32
  }
  func.func @transform_2(%arg0: i32) -> (i32, i32) {
    %c0_i32 = arith.constant 0 : i32
    %c0_i32_0 = arith.constant 0 : i32
    return %arg0, %c0_i32 : i32, i32
  }
  func.func @transform_3(%arg0: i32) -> (i32, i32) {
    %c0_i32 = arith.constant 0 : i32
    %c0_i32_0 = arith.constant 0 : i32
    %c0_i32_1 = arith.constant 0 : i32
    return %c0_i32, %c0_i32_0 : i32, i32
  }
  func.func @transform_4(%arg0: i32) -> (i32, i32) {
    %c0_i32 = arith.constant 0 : i32
    %c0_i32_0 = arith.constant 0 : i32
    %c0_i32_1 = arith.constant 0 : i32
    return %c0_i32, %c0_i32_0 : i32, i32
  }
  func.func @transform_5(%arg0: i32) -> (i32, i32) {
    %c0_i32 = arith.constant 0 : i32
    %c0_i32_0 = arith.constant 0 : i32
    %c0_i32_1 = arith.constant 0 : i32
    return %c0_i32, %c0_i32_0 : i32, i32
  }
  func.func @transform_6(%arg0: i32) -> (i32, i32) {
    %c0_i32 = arith.constant 0 : i32
    %c0_i32_0 = arith.constant 0 : i32
    %c0_i32_1 = arith.constant 0 : i32
    return %c0_i32, %c0_i32_0 : i32, i32
  }
  func.func @transform_7(%arg0: i32) -> (i32, i32) {
    %c0_i32 = arith.constant 0 : i32
    %c0_i32_0 = arith.constant 0 : i32
    %c0_i32_1 = arith.constant 0 : i32
    return %c0_i32, %c0_i32_0 : i32, i32
  }
  func.func @transform_8(%arg0: i32) -> (i32, i32) {
    %c0_i32 = arith.constant 0 : i32
    %c0_i32_0 = arith.constant 0 : i32
    %c0_i32_1 = arith.constant 0 : i32
    return %c0_i32, %c0_i32_0 : i32, i32
  }
  func.func @transform_9(%arg0: i32) -> (i32, i32) {
    %c0_i32 = arith.constant 0 : i32
    %c0_i32_0 = arith.constant 0 : i32
    %c0_i32_1 = arith.constant 0 : i32
    return %c0_i32, %c0_i32_0 : i32, i32
  }
  func.func @transform_10(%arg0: i32) -> (i32, i32) {
    %c0_i32 = arith.constant 0 : i32
    %c0_i32_0 = arith.constant 0 : i32
    %c0_i32_1 = arith.constant 0 : i32
    return %c0_i32, %c0_i32_0 : i32, i32
  }
  func.func @transform_11(%arg0: i32) -> (i32, i32) {
    %c0_i32 = arith.constant 0 : i32
    %c0_i32_0 = arith.constant 0 : i32
    %c0_i32_1 = arith.constant 0 : i32
    return %c0_i32, %c0_i32_0 : i32, i32
  }
  func.func @transform_12(%arg0: i32) -> (i32, i32) {
    %c0_i32 = arith.constant 0 : i32
    %c0_i32_0 = arith.constant 0 : i32
    %c0_i32_1 = arith.constant 0 : i32
    return %c0_i32, %c0_i32_0 : i32, i32
  }
  func.func @transform_13(%arg0: i32) -> i32 {
    %c0_i32 = arith.constant 0 : i32
    %c0_i32_0 = arith.constant 0 : i32
    return %c0_i32 : i32
  }
  func.func @transform_14(%arg0: i32) -> (i32, i32) {
    %c0_i32 = arith.constant 0 : i32
    %c0_i32_0 = arith.constant 0 : i32
    return %arg0, %c0_i32 : i32, i32
  }
  func.func @transform_15(%arg0: i32) -> (i32, i32) {
    %c0_i32 = arith.constant 0 : i32
    %c0_i32_0 = arith.constant 0 : i32
    return %arg0, %c0_i32 : i32, i32
  }
}

module attributes {stable_mosaic.version = 11 : i64} {
  func.func @attention_kernel(%arg0: i32, %arg1: i32, %arg2: memref<1x8x32xbf16, #tpu.memory_space<vmem>>, %arg3: memref<1x8x32xbf16, #tpu.memory_space<vmem>>, %arg4: memref<1x8x8xbf16, #tpu.memory_space<vmem>>, %arg5: memref<1x4x8x8xf32, #tpu.memory_space<vmem>>) attributes {dimension_semantics = [#tpu.dimension_semantics<parallel>, #tpu.dimension_semantics<parallel>], iteration_bounds = array<i64: 2, 1>, scalar_prefetch = 0 : i64, scratch_operands = 0 : i64, tpu.core_type = #tpu.core_type<tc>, window_params = [{transform_indices = @transform_0, window_bounds = array<i64: 1, 8, 32>}, {transform_indices = @transform_1, window_bounds = array<i64: 1, 8, 32>}, {transform_indices = @transform_2, window_bounds = array<i64: 1, 8, 8>}, {transform_indices = @transform_3, window_bounds = array<i64: 1, 4, 8, 8>}]} {
    %c0 = arith.constant 0 : index
    %c0_0 = arith.constant 0 : index
    %c0_1 = arith.constant 0 : index
    %0 = vector.load %arg2[%c0, %c0_0, %c0_1] : memref<1x8x32xbf16, #tpu.memory_space<vmem>>, vector<1x8x32xbf16>
    %1 = vector.shape_cast %0 : vector<1x8x32xbf16> to vector<8x32xbf16>
    %c0_2 = arith.constant 0 : index
    %c0_3 = arith.constant 0 : index
    %c0_4 = arith.constant 0 : index
    %2 = vector.load %arg3[%c0_2, %c0_3, %c0_4] : memref<1x8x32xbf16, #tpu.memory_space<vmem>>, vector<1x8x32xbf16>
    %3 = vector.shape_cast %2 : vector<1x8x32xbf16> to vector<8x32xbf16>
    %c0_5 = arith.constant 0 : index
    %c0_6 = arith.constant 0 : index
    %c0_7 = arith.constant 0 : index
    %4 = vector.load %arg4[%c0_5, %c0_6, %c0_7] : memref<1x8x8xbf16, #tpu.memory_space<vmem>>, vector<1x8x8xbf16>
    %5 = vector.shape_cast %4 : vector<1x8x8xbf16> to vector<8x8xbf16>
    %cst = arith.constant 0.000000e+00 : bf16
    %6 = vector.broadcast %cst : bf16 to vector<8x8xbf16>
    %7 = arith.cmpf one, %5, %6 : vector<8x8xbf16>
    %8 = vector.extract_strided_slice %1 {offsets = [0, 0], sizes = [8, 8], strides = [1, 1]} : vector<8x32xbf16> to vector<8x8xbf16>
    %9 = vector.extract_strided_slice %3 {offsets = [0, 0], sizes = [8, 8], strides = [1, 1]} : vector<8x32xbf16> to vector<8x8xbf16>
    %cst_8 = arith.constant dense<0.000000e+00> : vector<8x8xf32>
    %10 = tpu.matmul %8, %9, %cst_8 {dimension_numbers = #tpu.dot_dimension_numbers<[1], [1], [0], [0], [0, 0, 1, 0], [], []>} : vector<8x8xbf16>, vector<8x8xbf16>, vector<8x8xf32> -> vector<8x8xf32>
    %cst_9 = arith.constant -1.000000e+04 : f32
    %11 = vector.broadcast %cst_9 : f32 to vector<8x8xf32>
    %12 = arith.select %7, %11, %10 : vector<8x8xi1>, vector<8x8xf32>
    %cst_10 = arith.constant dense<0xFF800000> : vector<8xf32>
    %13 = vector.multi_reduction <maximumf>, %12, %cst_10 [1] : vector<8x8xf32> to vector<8xf32>
    %14 = vector.shape_cast %13 : vector<8xf32> to vector<8x1xf32>
    %15 = vector.broadcast %14 : vector<8x1xf32> to vector<8x8xf32>
    %16 = arith.subf %12, %15 : vector<8x8xf32>
    %17 = math.exp %16 : vector<8x8xf32>
    %cst_11 = arith.constant dense<0.000000e+00> : vector<8xf32>
    %18 = vector.multi_reduction <add>, %17, %cst_11 [1] : vector<8x8xf32> to vector<8xf32>
    %19 = vector.shape_cast %18 : vector<8xf32> to vector<8x1xf32>
    %20 = tpu.reciprocal %19 {approx = true} : vector<8x1xf32> -> vector<8x1xf32>
    %21 = vector.broadcast %20 : vector<8x1xf32> to vector<8x8xf32>
    %22 = arith.mulf %17, %21 : vector<8x8xf32>
    %c0_12 = arith.constant 0 : index
    %c0_13 = arith.constant 0 : index
    %c0_14 = arith.constant 0 : index
    %c0_15 = arith.constant 0 : index
    %23 = vector.load %arg5[%c0_12, %c0_13, %c0_14, %c0_15] : memref<1x4x8x8xf32, #tpu.memory_space<vmem>>, vector<1x1x8x8xf32>
    %24 = vector.shape_cast %23 : vector<1x1x8x8xf32> to vector<8x8xf32>
    %25 = vector.shape_cast %22 : vector<8x8xf32> to vector<1x1x8x8xf32>
    tpu.vector_store %arg5[%c0_12, %c0_13, %c0_14, %c0_15], %25 {strides = array<i32>} : memref<1x4x8x8xf32, #tpu.memory_space<vmem>>, vector<1x1x8x8xf32>,
    %26 = vector.extract_strided_slice %1 {offsets = [0, 8], sizes = [8, 8], strides = [1, 1]} : vector<8x32xbf16> to vector<8x8xbf16>
    %27 = vector.extract_strided_slice %3 {offsets = [0, 8], sizes = [8, 8], strides = [1, 1]} : vector<8x32xbf16> to vector<8x8xbf16>
    %cst_16 = arith.constant dense<0.000000e+00> : vector<8x8xf32>
    %28 = tpu.matmul %26, %27, %cst_16 {dimension_numbers = #tpu.dot_dimension_numbers<[1], [1], [0], [0], [0, 0, 1, 0], [], []>} : vector<8x8xbf16>, vector<8x8xbf16>, vector<8x8xf32> -> vector<8x8xf32>
    %cst_17 = arith.constant -1.000000e+04 : f32
    %29 = vector.broadcast %cst_17 : f32 to vector<8x8xf32>
    %30 = arith.select %7, %29, %28 : vector<8x8xi1>, vector<8x8xf32>
    %cst_18 = arith.constant dense<0xFF800000> : vector<8xf32>
    %31 = vector.multi_reduction <maximumf>, %30, %cst_18 [1] : vector<8x8xf32> to vector<8xf32>
    %32 = vector.shape_cast %31 : vector<8xf32> to vector<8x1xf32>
    %33 = vector.broadcast %32 : vector<8x1xf32> to vector<8x8xf32>
    %34 = arith.subf %30, %33 : vector<8x8xf32>
    %35 = math.exp %34 : vector<8x8xf32>
    %cst_19 = arith.constant dense<0.000000e+00> : vector<8xf32>
    %36 = vector.multi_reduction <add>, %35, %cst_19 [1] : vector<8x8xf32> to vector<8xf32>
    %37 = vector.shape_cast %36 : vector<8xf32> to vector<8x1xf32>
    %38 = tpu.reciprocal %37 {approx = true} : vector<8x1xf32> -> vector<8x1xf32>
    %39 = vector.broadcast %38 : vector<8x1xf32> to vector<8x8xf32>
    %40 = arith.mulf %35, %39 : vector<8x8xf32>
    %c0_20 = arith.constant 0 : index
    %c1 = arith.constant 1 : index
    %c0_21 = arith.constant 0 : index
    %c0_22 = arith.constant 0 : index
    %41 = vector.load %arg5[%c0_20, %c1, %c0_21, %c0_22] : memref<1x4x8x8xf32, #tpu.memory_space<vmem>>, vector<1x1x8x8xf32>
    %42 = vector.shape_cast %41 : vector<1x1x8x8xf32> to vector<8x8xf32>
    %43 = vector.shape_cast %40 : vector<8x8xf32> to vector<1x1x8x8xf32>
    tpu.vector_store %arg5[%c0_20, %c1, %c0_21, %c0_22], %43 {strides = array<i32>} : memref<1x4x8x8xf32, #tpu.memory_space<vmem>>, vector<1x1x8x8xf32>,
    %44 = vector.extract_strided_slice %1 {offsets = [0, 16], sizes = [8, 8], strides = [1, 1]} : vector<8x32xbf16> to vector<8x8xbf16>
    %45 = vector.extract_strided_slice %3 {offsets = [0, 16], sizes = [8, 8], strides = [1, 1]} : vector<8x32xbf16> to vector<8x8xbf16>
    %cst_23 = arith.constant dense<0.000000e+00> : vector<8x8xf32>
    %46 = tpu.matmul %44, %45, %cst_23 {dimension_numbers = #tpu.dot_dimension_numbers<[1], [1], [0], [0], [0, 0, 1, 0], [], []>} : vector<8x8xbf16>, vector<8x8xbf16>, vector<8x8xf32> -> vector<8x8xf32>
    %cst_24 = arith.constant -1.000000e+04 : f32
    %47 = vector.broadcast %cst_24 : f32 to vector<8x8xf32>
    %48 = arith.select %7, %47, %46 : vector<8x8xi1>, vector<8x8xf32>
    %cst_25 = arith.constant dense<0xFF800000> : vector<8xf32>
    %49 = vector.multi_reduction <maximumf>, %48, %cst_25 [1] : vector<8x8xf32> to vector<8xf32>
    %50 = vector.shape_cast %49 : vector<8xf32> to vector<8x1xf32>
    %51 = vector.broadcast %50 : vector<8x1xf32> to vector<8x8xf32>
    %52 = arith.subf %48, %51 : vector<8x8xf32>
    %53 = math.exp %52 : vector<8x8xf32>
    %cst_26 = arith.constant dense<0.000000e+00> : vector<8xf32>
    %54 = vector.multi_reduction <add>, %53, %cst_26 [1] : vector<8x8xf32> to vector<8xf32>
    %55 = vector.shape_cast %54 : vector<8xf32> to vector<8x1xf32>
    %56 = tpu.reciprocal %55 {approx = true} : vector<8x1xf32> -> vector<8x1xf32>
    %57 = vector.broadcast %56 : vector<8x1xf32> to vector<8x8xf32>
    %58 = arith.mulf %53, %57 : vector<8x8xf32>
    %c0_27 = arith.constant 0 : index
    %c2 = arith.constant 2 : index
    %c0_28 = arith.constant 0 : index
    %c0_29 = arith.constant 0 : index
    %59 = vector.load %arg5[%c0_27, %c2, %c0_28, %c0_29] : memref<1x4x8x8xf32, #tpu.memory_space<vmem>>, vector<1x1x8x8xf32>
    %60 = vector.shape_cast %59 : vector<1x1x8x8xf32> to vector<8x8xf32>
    %61 = vector.shape_cast %58 : vector<8x8xf32> to vector<1x1x8x8xf32>
    tpu.vector_store %arg5[%c0_27, %c2, %c0_28, %c0_29], %61 {strides = array<i32>} : memref<1x4x8x8xf32, #tpu.memory_space<vmem>>, vector<1x1x8x8xf32>,
    %62 = vector.extract_strided_slice %1 {offsets = [0, 24], sizes = [8, 8], strides = [1, 1]} : vector<8x32xbf16> to vector<8x8xbf16>
    %63 = vector.extract_strided_slice %3 {offsets = [0, 24], sizes = [8, 8], strides = [1, 1]} : vector<8x32xbf16> to vector<8x8xbf16>
    %cst_30 = arith.constant dense<0.000000e+00> : vector<8x8xf32>
    %64 = tpu.matmul %62, %63, %cst_30 {dimension_numbers = #tpu.dot_dimension_numbers<[1], [1], [0], [0], [0, 0, 1, 0], [], []>} : vector<8x8xbf16>, vector<8x8xbf16>, vector<8x8xf32> -> vector<8x8xf32>
    %cst_31 = arith.constant -1.000000e+04 : f32
    %65 = vector.broadcast %cst_31 : f32 to vector<8x8xf32>
    %66 = arith.select %7, %65, %64 : vector<8x8xi1>, vector<8x8xf32>
    %cst_32 = arith.constant dense<0xFF800000> : vector<8xf32>
    %67 = vector.multi_reduction <maximumf>, %66, %cst_32 [1] : vector<8x8xf32> to vector<8xf32>
    %68 = vector.shape_cast %67 : vector<8xf32> to vector<8x1xf32>
    %69 = vector.broadcast %68 : vector<8x1xf32> to vector<8x8xf32>
    %70 = arith.subf %66, %69 : vector<8x8xf32>
    %71 = math.exp %70 : vector<8x8xf32>
    %cst_33 = arith.constant dense<0.000000e+00> : vector<8xf32>
    %72 = vector.multi_reduction <add>, %71, %cst_33 [1] : vector<8x8xf32> to vector<8xf32>
    %73 = vector.shape_cast %72 : vector<8xf32> to vector<8x1xf32>
    %74 = tpu.reciprocal %73 {approx = true} : vector<8x1xf32> -> vector<8x1xf32>
    %75 = vector.broadcast %74 : vector<8x1xf32> to vector<8x8xf32>
    %76 = arith.mulf %71, %75 : vector<8x8xf32>
    %c0_34 = arith.constant 0 : index
    %c3 = arith.constant 3 : index
    %c0_35 = arith.constant 0 : index
    %c0_36 = arith.constant 0 : index
    %77 = vector.load %arg5[%c0_34, %c3, %c0_35, %c0_36] : memref<1x4x8x8xf32, #tpu.memory_space<vmem>>, vector<1x1x8x8xf32>
    %78 = vector.shape_cast %77 : vector<1x1x8x8xf32> to vector<8x8xf32>
    %79 = vector.shape_cast %76 : vector<8x8xf32> to vector<1x1x8x8xf32>
    tpu.vector_store %arg5[%c0_34, %c3, %c0_35, %c0_36], %79 {strides = array<i32>} : memref<1x4x8x8xf32, #tpu.memory_space<vmem>>, vector<1x1x8x8xf32>,
    return
  }
  func.func @transform_0(%arg0: i32, %arg1: i32) -> (i32, i32, i32) {
    %c0_i32 = arith.constant 0 : i32
    %c0_i32_0 = arith.constant 0 : i32
    return %arg0, %arg1, %c0_i32 : i32, i32, i32
  }
  func.func @transform_1(%arg0: i32, %arg1: i32) -> (i32, i32, i32) {
    %c0_i32 = arith.constant 0 : i32
    %c0_i32_0 = arith.constant 0 : i32
    %c0_i32_1 = arith.constant 0 : i32
    return %arg0, %c0_i32, %c0_i32_0 : i32, i32, i32
  }
  func.func @transform_2(%arg0: i32, %arg1: i32) -> (i32, i32, i32) {
    %c0_i32 = arith.constant 0 : i32
    %c0_i32_0 = arith.constant 0 : i32
    return %arg0, %arg1, %c0_i32 : i32, i32, i32
  }
  func.func @transform_3(%arg0: i32, %arg1: i32) -> (i32, i32, i32, i32) {
    %c0_i32 = arith.constant 0 : i32
    %c0_i32_0 = arith.constant 0 : i32
    %c0_i32_1 = arith.constant 0 : i32
    return %arg0, %c0_i32, %arg1, %c0_i32_0 : i32, i32, i32, i32
  }
}

</mosaic_0001>

<llo_original>
// kernel: multi_head_dual_attention.2
$region0: #{multi_head_dual_attention.2}
  #allocation0 [shape = 'u32[]', space=smem, size = 0x4, offset = 0x4, fixed_abs, tag = 'smem constant byte address 0x4 - core index']
  #allocation1 [shape = 'u32[144,128]{1,0:T(1,128)}', space=vmem, size = 0x12000, scoped, tag = 'internal scratch']
  %s0 = inlined_call_operand.hbm [shape: f32[16,32], index: 0, kind: input, shape index: {}]
  %s1 = inlined_call_operand.hbm [shape: f32[16,32], index: 1, kind: input, shape index: {}]
  %s2 = inlined_call_operand.hbm [shape: f32[16,32], index: 2, kind: input, shape index: {}]
  %s3 = inlined_call_operand.vmem [shape: f32[32,32], index: 3, kind: input, shape index: {}]
  %s4 = inlined_call_operand.vmem [shape: f32[1,32], index: 4, kind: input, shape index: {}]
  %s5 = inlined_call_operand.vmem [shape: f32[32,32], index: 5, kind: input, shape index: {}]
  %s6 = inlined_call_operand.vmem [shape: f32[1,32], index: 6, kind: input, shape index: {}]
  %s7 = inlined_call_operand.vmem [shape: f32[1,32], index: 7, kind: input, shape index: {}]
  %s8 = inlined_call_operand.hbm [shape: f32[32,32], index: 8, kind: input, shape index: {}]
  %s9 = inlined_call_operand.vmem [shape: f32[1,32], index: 9, kind: input, shape index: {}]
  %s10 = inlined_call_operand.hbm [shape: f32[32,32], index: 10, kind: input, shape index: {}]
  %s11 = inlined_call_operand.vmem [shape: f32[1,32], index: 11, kind: input, shape index: {}]
  %s12 = inlined_call_operand.hbm [shape: f32[1,32], index: 12, kind: input, shape index: {}]
  %s13 = inlined_call_operand.vmem [shape: f32[2], index: 13, kind: input, shape index: {}]
  %s14 = inlined_call_operand.vmem [shape: bf16[16,32], index: 14, kind: output, shape index: {0}]
  %s15 = inlined_call_operand.vmem [shape: bf16[16,32], index: 15, kind: output, shape index: {1}]
  %16 = xla_tuple %s14, %s15
  %s17 = sld [smem:[#allocation0]]
  $region102: #{multi_head_dual_attention.2} parent=0
    _
  %s19 = ssub.s32 1, %s17
  %s20 = scalar_select 0, %s19, %s17
  $region1: #{multi_head_dual_attention.2} parent=0
    #allocation2 [shape = 'u8[8192]{0}', space=vmem, size = 0x2000, scoped, tag = 'input window, operand 0, single buffered']
    #allocation3 [shape = 's32[1]{0}', space=sflag, size = 0x4, scoped, tag = 'scoped memory for multi_head_dual_attention.2']
    #allocation4 [shape = 's32[1]{0}', space=sflag, size = 0x4, scoped, tag = 'scoped memory for multi_head_dual_attention.2']
    #allocation5 [shape = 'u8[8192]{0}', space=vmem, size = 0x2000, scoped, tag = 'input window, operand 1, single buffered']
    #allocation6 [shape = 's32[1]{0}', space=sflag, size = 0x4, scoped, tag = 'scoped memory for multi_head_dual_attention.2']
    #allocation7 [shape = 'u8[8192]{0}', space=vmem, size = 0x2000, scoped, tag = 'input window, operand 2, single buffered']
    #allocation8 [shape = 'u8[16384]{0}', space=vmem, size = 0x4000, scoped, tag = 'input window, operand 8, single buffered']
    #allocation9 [shape = 's32[1]{0}', space=sflag, size = 0x4, scoped, tag = 'scoped memory for multi_head_dual_attention.2']
    #allocation10 [shape = 'u8[16384]{0}', space=vmem, size = 0x4000, scoped, tag = 'input window, operand 10, single buffered']
    #allocation11 [shape = 'u8[512]{0}', space=vmem, size = 0x400, scoped, tag = 'input window, operand 12, single buffered']
    #allocation12 [shape = 's32[1]{0}', space=sflag, size = 0x4, scoped, tag = 'scoped memory for multi_head_dual_attention.2']
    #allocation13 [shape = 'u8[512]{0}', space=smem, size = 0x200, scoped, tag = 'input window, operand 13, single buffered']
    %21 = vsyncpa [#allocation3], 0
    %22 = vsyncpa [#allocation6], 0
    %23 = vsyncpa [#allocation9], 0
    %24 = vsyncpa [#allocation12], 0
    %25 = vsyncpa [#allocation4], 0
    // Predicated region
    $region2: #{multi_head_dual_attention.2} parent=1 // pred_check
      _
    $region3: #{multi_head_dual_attention.2} parent=1 // pred_check_branch
      %27 = sbr.rel (0) target = $region5
    $region4: #{multi_head_dual_attention.2} parent=1 // pred_region
      %s29 = ssub.s32 256, 256
      %30 = vsyncadd [#allocation3], %s29
      %s31 = sshll.u32 [#allocation2], 4
      %s32 = int_to_ptr.vmem [resolvable:$true] %s31
      %37 = dma.hbm_to_vmem [thread:$0]  %s0, 256, %s32, [#allocation3], 128, 128, 8
    $region5: #{multi_head_dual_attention.2} parent=1 // pred_fallthru
      _
    // Predicated region
    $region6: #{multi_head_dual_attention.2} parent=1 // pred_check
      _
    $region7: #{multi_head_dual_attention.2} parent=1 // pred_check_branch
      %39 = sbr.rel (0) target = $region9
    $region8: #{multi_head_dual_attention.2} parent=1 // pred_region
      %s41 = ssub.s32 256, 256
      %42 = vsyncadd [#allocation6], %s41
      %s43 = sshll.u32 [#allocation5], 4
      %s44 = int_to_ptr.vmem [resolvable:$true] %s43
      %49 = dma.hbm_to_vmem [thread:$0]  %s1, 256, %s44, [#allocation6], 128, 128, 8
    $region9: #{multi_head_dual_attention.2} parent=1 // pred_fallthru
      _
    // Predicated region
    $region10: #{multi_head_dual_attention.2} parent=1 // pred_check
      _
    $region11: #{multi_head_dual_attention.2} parent=1 // pred_check_branch
      %51 = sbr.rel (0) target = $region13
    $region12: #{multi_head_dual_attention.2} parent=1 // pred_region
      %s53 = ssub.s32 256, 256
      %54 = vsyncadd [#allocation6], %s53
      %s55 = sshll.u32 [#allocation7], 4
      %s56 = int_to_ptr.vmem [resolvable:$true] %s55
      %61 = dma.hbm_to_vmem [thread:$0]  %s2, 256, %s56, [#allocation6], 128, 128, 8
    $region13: #{multi_head_dual_attention.2} parent=1 // pred_fallthru
      _
    // Predicated region
    $region14: #{multi_head_dual_attention.2} parent=1 // pred_check
      _
    $region15: #{multi_head_dual_attention.2} parent=1 // pred_check_branch
      %63 = sbr.rel (0) target = $region17
    $region16: #{multi_head_dual_attention.2} parent=1 // pred_region
      _
    $region17: #{multi_head_dual_attention.2} parent=1 // pred_fallthru
      _
    // Predicated region
    $region18: #{multi_head_dual_attention.2} parent=1 // pred_check
      _
    $region19: #{multi_head_dual_attention.2} parent=1 // pred_check_branch
      %65 = sbr.rel (0) target = $region21
    $region20: #{multi_head_dual_attention.2} parent=1 // pred_region
      _
    $region21: #{multi_head_dual_attention.2} parent=1 // pred_fallthru
      _
    // Predicated region
    $region22: #{multi_head_dual_attention.2} parent=1 // pred_check
      _
    $region23: #{multi_head_dual_attention.2} parent=1 // pred_check_branch
      %67 = sbr.rel (0) target = $region25
    $region24: #{multi_head_dual_attention.2} parent=1 // pred_region
      _
    $region25: #{multi_head_dual_attention.2} parent=1 // pred_fallthru
      _
    // Predicated region
    $region26: #{multi_head_dual_attention.2} parent=1 // pred_check
      _
    $region27: #{multi_head_dual_attention.2} parent=1 // pred_check_branch
      %69 = sbr.rel (0) target = $region29
    $region28: #{multi_head_dual_attention.2} parent=1 // pred_region
      _
    $region29: #{multi_head_dual_attention.2} parent=1 // pred_fallthru
      _
    // Predicated region
    $region30: #{multi_head_dual_attention.2} parent=1 // pred_check
      _
    $region31: #{multi_head_dual_attention.2} parent=1 // pred_check_branch
      %71 = sbr.rel (0) target = $region33
    $region32: #{multi_head_dual_attention.2} parent=1 // pred_region
      _
    $region33: #{multi_head_dual_attention.2} parent=1 // pred_fallthru
      _
    // Predicated region
    $region34: #{multi_head_dual_attention.2} parent=1 // pred_check
      _
    $region35: #{multi_head_dual_attention.2} parent=1 // pred_check_branch
      %73 = sbr.rel (0) target = $region37
    $region36: #{multi_head_dual_attention.2} parent=1 // pred_region
      %s75 = ssub.s32 512, 512
      %76 = vsyncadd [#allocation9], %s75
      %s77 = sshll.u32 [#allocation8], 4
      %s78 = int_to_ptr.vmem [resolvable:$true] %s77
      %83 = dma.hbm_to_vmem [thread:$0]  %s8, 512, %s78, [#allocation9], 128, 128, 8
    $region37: #{multi_head_dual_attention.2} parent=1 // pred_fallthru
      _
    // Predicated region
    $region38: #{multi_head_dual_attention.2} parent=1 // pred_check
      _
    $region39: #{multi_head_dual_attention.2} parent=1 // pred_check_branch
      %85 = sbr.rel (0) target = $region41
    $region40: #{multi_head_dual_attention.2} parent=1 // pred_region
      _
    $region41: #{multi_head_dual_attention.2} parent=1 // pred_fallthru
      _
    // Predicated region
    $region42: #{multi_head_dual_attention.2} parent=1 // pred_check
      _
    $region43: #{multi_head_dual_attention.2} parent=1 // pred_check_branch
      %87 = sbr.rel (0) target = $region45
    $region44: #{multi_head_dual_attention.2} parent=1 // pred_region
      %s89 = ssub.s32 512, 512
      %90 = vsyncadd [#allocation9], %s89
      %s91 = sshll.u32 [#allocation10], 4
      %s92 = int_to_ptr.vmem [resolvable:$true] %s91
      %97 = dma.hbm_to_vmem [thread:$0]  %s10, 512, %s92, [#allocation9], 128, 128, 8
    $region45: #{multi_head_dual_attention.2} parent=1 // pred_fallthru
      _
    // Predicated region
    $region46: #{multi_head_dual_attention.2} parent=1 // pred_check
      _
    $region47: #{multi_head_dual_attention.2} parent=1 // pred_check_branch
      %99 = sbr.rel (0) target = $region49
    $region48: #{multi_head_dual_attention.2} parent=1 // pred_region
      _
    $region49: #{multi_head_dual_attention.2} parent=1 // pred_fallthru
      _
    // Predicated region
    $region50: #{multi_head_dual_attention.2} parent=1 // pred_check
      _
    $region51: #{multi_head_dual_attention.2} parent=1 // pred_check_branch
      %101 = sbr.rel (0) target = $region53
    $region52: #{multi_head_dual_attention.2} parent=1 // pred_region
      %s103 = ssub.s32 16, 16
      %104 = vsyncadd [#allocation12], %s103
      %s106 = sshll.u32 [#allocation11], 4
      %s107 = int_to_ptr.vmem [resolvable:$true] %s106
      %109 = dma.hbm_to_vmem [thread:$0]  %s12, 16, %s107, [#allocation12]
    $region53: #{multi_head_dual_attention.2} parent=1 // pred_fallthru
      _
    // Predicated region
    $region54: #{multi_head_dual_attention.2} parent=1 // pred_check
      _
    $region55: #{multi_head_dual_attention.2} parent=1 // pred_check_branch
      %111 = sbr.rel (0) target = $region57
    $region56: #{multi_head_dual_attention.2} parent=1 // pred_region
      %s113 = ssub.s32 16, 16
      %114 = vsyncadd [#allocation4], %s113
      %s116 = sshll.u32 %s13, 4
      %s117 = int_to_ptr.vmem [resolvable:$true] %s116
      %119 = dma.vmem_to_smem %s117, 16, [#allocation13], [#allocation4]
    $region57: #{multi_head_dual_attention.2} parent=1 // pred_fallthru
      _
    // Predicated region
    $region58: #{multi_head_dual_attention.2} parent=1 // pred_check
      _
    $region59: #{multi_head_dual_attention.2} parent=1 // pred_check_branch
      %121 = sbr.rel (0) target = $region61
    $region60: #{multi_head_dual_attention.2} parent=1 // pred_region
      %122 = dma.done [#allocation3], 256
    $region61: #{multi_head_dual_attention.2} parent=1 // pred_fallthru
      _
    // Predicated region
    $region62: #{multi_head_dual_attention.2} parent=1 // pred_check
      _
    $region63: #{multi_head_dual_attention.2} parent=1 // pred_check_branch
      %124 = sbr.rel (0) target = $region65
    $region64: #{multi_head_dual_attention.2} parent=1 // pred_region
      %125 = dma.done [#allocation6], 256
    $region65: #{multi_head_dual_attention.2} parent=1 // pred_fallthru
      _
    // Predicated region
    $region66: #{multi_head_dual_attention.2} parent=1 // pred_check
      _
    $region67: #{multi_head_dual_attention.2} parent=1 // pred_check_branch
      %127 = sbr.rel (0) target = $region69
    $region68: #{multi_head_dual_attention.2} parent=1 // pred_region
      %128 = dma.done [#allocation6], 256
    $region69: #{multi_head_dual_attention.2} parent=1 // pred_fallthru
      _
    // Predicated region
    $region70: #{multi_head_dual_attention.2} parent=1 // pred_check
      _
    $region71: #{multi_head_dual_attention.2} parent=1 // pred_check_branch
      %130 = sbr.rel (0) target = $region73
    $region72: #{multi_head_dual_attention.2} parent=1 // pred_region
      %131 = dma.done [#allocation9], 512
    $region73: #{multi_head_dual_attention.2} parent=1 // pred_fallthru
      _
    // Predicated region
    $region74: #{multi_head_dual_attention.2} parent=1 // pred_check
      _
    $region75: #{multi_head_dual_attention.2} parent=1 // pred_check_branch
      %133 = sbr.rel (0) target = $region77
    $region76: #{multi_head_dual_attention.2} parent=1 // pred_region
      %134 = dma.done [#allocation9], 512
    $region77: #{multi_head_dual_attention.2} parent=1 // pred_fallthru
      _
    // Predicated region
    $region78: #{multi_head_dual_attention.2} parent=1 // pred_check
      _
    $region79: #{multi_head_dual_attention.2} parent=1 // pred_check_branch
      %136 = sbr.rel (0) target = $region81
    $region80: #{multi_head_dual_attention.2} parent=1 // pred_region
      %137 = dma.done [#allocation12], 16
    $region81: #{multi_head_dual_attention.2} parent=1 // pred_fallthru
      _
    // Predicated region
    $region82: #{multi_head_dual_attention.2} parent=1 // pred_check
      _
    $region83: #{multi_head_dual_attention.2} parent=1 // pred_check_branch
      %139 = sbr.rel (0) target = $region85
    $region84: #{multi_head_dual_attention.2} parent=1 // pred_region
      %140 = dma.done [#allocation4], 16
    $region85: #{multi_head_dual_attention.2} parent=1 // pred_fallthru
      _
    %141 = sfence
    %v143 = vld [vmem:[#allocation2] sm:$0xff]
    %v144 = vld [vmem:[#allocation2 + $0x8] sm:$0xff]
    %v145 = vpack.c.bf16 %v144, %v143
    %v146 = vld [vmem:[#allocation5] sm:$0xff]
    %v147 = vld [vmem:[#allocation5 + $0x8] sm:$0xff]
    %v148 = vpack.c.bf16 %v147, %v146
    %v149 = vld [vmem:[#allocation7] sm:$0xff]
    %v150 = vld [vmem:[#allocation7 + $0x8] sm:$0xff]
    %v151 = vpack.c.bf16 %v150, %v149
    %s152 = sld [smem:[#allocation13]]
    %v153 = vld [vmem:[%s3] sm:$0xff]
    %v154 = vld [vmem:[%s3 + $0x8] sm:$0xff]
    %v155 = vld [vmem:[%s3 + $0x10] sm:$0xff]
    %v156 = vld [vmem:[%s3 + $0x18] sm:$0xff]
    %v157 = vpack.c.bf16 %v154, %v153
    %v158 = vpack.c.bf16 %v156, %v155
    %v159 = vld [vmem:[%s4] sm:$0x1]
    %v161 = vlaneseq
    %v162 = vshrl.u32 %v161, 7
    %v163 = vsub.s32 0, %v162
    %v164 = vrot.slane %v159, %v163
    %vm166 = vcmask 261120
    %v168 = vsel %vm166, %v145, 0
    %v171 = vsel %vm166, %v157, 0
    %v174 = vsel %vm166, %v158, 0
    %176 = vmatprep.subr.bf16.mxu0 0
    %177 = vmatpush1.bf16.xpose.msra.mxu0 %v171
    %178 = vmatprep.subr.bf16.mxu0 0
    %179 = vmatpush1.bf16.xpose.msra.mxu0 %v174
    %180 = vmatprep.subr.bf16.mxu0 0
    %181 = vmatpush1.bf16.xpose.msra.mxu0 0
    %182 = vmatprep.subr.bf16.mxu0 0
    %183 = vmatpush1.bf16.xpose.msra.mxu0 0
    %184 = vmatprep.subr.bf16.mxu0 0
    %185 = vmatpush1.bf16.xpose.msra.mxu0 0
    %186 = vmatprep.subr.bf16.mxu0 0
    %187 = vmatpush1.bf16.xpose.msra.mxu0 0
    %188 = vmatprep.subr.bf16.mxu0 0
    %189 = vmatpush1.bf16.xpose.msra.mxu0 0
    %190 = vmatprep.subr.bf16.mxu0 0
    %191 = vmatpush1.bf16.xpose.msra.mxu0 0
    %192 = vmatprep.subr.bf16.mxu0 0
    %193 = vmatpush1.bf16.xpose.msra.mxu0 0
    %194 = vmatprep.subr.bf16.mxu0 0
    %195 = vmatpush1.bf16.xpose.msra.mxu0 0
    %196 = vmatprep.subr.bf16.mxu0 0
    %197 = vmatpush1.bf16.xpose.msra.mxu0 0
    %198 = vmatprep.subr.bf16.mxu0 0
    %199 = vmatpush1.bf16.xpose.msra.mxu0 0
    %200 = vmatprep.subr.bf16.mxu0 0
    %201 = vmatpush1.bf16.xpose.msra.mxu0 0
    %202 = vmatprep.subr.bf16.mxu0 0
    %203 = vmatpush1.bf16.xpose.msra.mxu0 0
    %204 = vmatprep.subr.bf16.mxu0 0
    %205 = vmatpush1.bf16.xpose.msra.mxu0 0
    %206 = vmatprep.subr.bf16.mxu0 0
    %207 = vmatpush1.bf16.xpose.msra.mxu0 0
    %208 = vmatprep.mubr.bf16.mxu0 0
    %209 = vmatmul.mubr.bf16.gmra.mrb[0].mxu0 %v168
    %v210 = vpop.f32.mrb[0].mxu0
    %v211 = vadd.f32 %v164, %v210
    %v212 = vpop.f32.mrb[0].mxu0
    %v213 = vpop.f32.mrb[0].mxu0
    %v214 = vadd.f32 %v164, %v213
    %v215 = vpop.f32.mrb[0].mxu0
    %216 = vdwg.mxu0
    %v217 = vld [vmem:[%s5] sm:$0xff]
    %v218 = vld [vmem:[%s5 + $0x8] sm:$0xff]
    %v219 = vld [vmem:[%s5 + $0x10] sm:$0xff]
    %v220 = vld [vmem:[%s5 + $0x18] sm:$0xff]
    %v221 = vpack.c.bf16 %v218, %v217
    %v222 = vpack.c.bf16 %v220, %v219
    %v223 = vld [vmem:[%s6] sm:$0x1]
    %v225 = vlaneseq
    %v226 = vshrl.u32 %v225, 7
    %v227 = vsub.s32 0, %v226
    %v228 = vrot.slane %v223, %v227
    %v231 = vsel %vm166, %v151, 0
    %v234 = vsel %vm166, %v221, 0
    %v237 = vsel %vm166, %v222, 0
    %239 = vmatprep.subr.bf16.mxu0 0
    %240 = vmatpush1.bf16.xpose.msra.mxu0 %v234
    %241 = vmatprep.subr.bf16.mxu0 0
    %242 = vmatpush1.bf16.xpose.msra.mxu0 %v237
    %243 = vmatprep.subr.bf16.mxu0 0
    %244 = vmatpush1.bf16.xpose.msra.mxu0 0
    %245 = vmatprep.subr.bf16.mxu0 0
    %246 = vmatpush1.bf16.xpose.msra.mxu0 0
    %247 = vmatprep.subr.bf16.mxu0 0
    %248 = vmatpush1.bf16.xpose.msra.mxu0 0
    %249 = vmatprep.subr.bf16.mxu0 0
    %250 = vmatpush1.bf16.xpose.msra.mxu0 0
    %251 = vmatprep.subr.bf16.mxu0 0
    %252 = vmatpush1.bf16.xpose.msra.mxu0 0
    %253 = vmatprep.subr.bf16.mxu0 0
    %254 = vmatpush1.bf16.xpose.msra.mxu0 0
    %255 = vmatprep.subr.bf16.mxu0 0
    %256 = vmatpush1.bf16.xpose.msra.mxu0 0
    %257 = vmatprep.subr.bf16.mxu0 0
    %258 = vmatpush1.bf16.xpose.msra.mxu0 0
    %259 = vmatprep.subr.bf16.mxu0 0
    %260 = vmatpush1.bf16.xpose.msra.mxu0 0
    %261 = vmatprep.subr.bf16.mxu0 0
    %262 = vmatpush1.bf16.xpose.msra.mxu0 0
    %263 = vmatprep.subr.bf16.mxu0 0
    %264 = vmatpush1.bf16.xpose.msra.mxu0 0
    %265 = vmatprep.subr.bf16.mxu0 0
    %266 = vmatpush1.bf16.xpose.msra.mxu0 0
    %267 = vmatprep.subr.bf16.mxu0 0
    %268 = vmatpush1.bf16.xpose.msra.mxu0 0
    %269 = vmatprep.subr.bf16.mxu0 0
    %270 = vmatpush1.bf16.xpose.msra.mxu0 0
    %271 = vmatprep.mubr.bf16.mxu0 0
    %272 = vmatmul.mubr.bf16.gmra.mrb[0].mxu0 %v231
    %v273 = vpop.f32.mrb[0].mxu0
    %v274 = vadd.f32 %v228, %v273
    %v275 = vpop.f32.mrb[0].mxu0
    %v276 = vpop.f32.mrb[0].mxu0
    %v277 = vadd.f32 %v228, %v276
    %v278 = vpop.f32.mrb[0].mxu0
    %279 = vdwg.mxu0
    %v280 = vadd.f32 %v211, %v274
    %v281 = vadd.f32 %v214, %v277
    %v282 = vld [vmem:[%s7] sm:$0x1]
    %v284 = vlaneseq
    %v285 = vshrl.u32 %v284, 7
    %v286 = vsub.s32 0, %v285
    %v287 = vrot.slane %v282, %v286
    %v289 = vmul.f32 %v280, %v287
    %v290 = vmul.f32 %v281, %v287
    %v291 = vsel %vm166, %v289, 0.0
    %292 = vadd.xlane.f32.xlu0 %v291
    %v293 = vpop.xlane.xlu0 %292
    %v294 = vsel %vm166, %v290, 0.0
    %295 = vadd.xlane.f32.xlu0 %v294
    %v296 = vpop.xlane.xlu0 %295
    %s297 = smul.f32 %s152, 2.0
    %v298 = vstv %s297
    %v299 = vadd.f32 %v293, %v298
    %v300 = vadd.f32 %v296, %v298
    %v301 = vxor.u32 %v299, 2147483648
    %v302 = vxor.u32 %v300, 2147483648
    %v303 = vmul.f32 %v301, 1.442695
    %v304 = vpow.pop %v303
    %v305 = vmul.f32 %v302, 1.442695
    %v306 = vpow.pop %v305
    %v307 = vadd.f32 %v304, 1.0
    %v308 = vadd.f32 %v306, 1.0
    %v309 = vrcp.pop %v307
    %v310 = vmul.f32 1.0, %v309
    %v311 = vrcp.pop %v308
    %v312 = vmul.f32 1.0, %v311
    %v313 = vsub.f32 1.0, %v310
    %v314 = vsub.f32 1.0, %v312
    %v315 = vmul.f32 %v313, %v211
    %v316 = vmul.f32 %v314, %v214
    %v317 = vmul.f32 %v310, %v274
    %v318 = vmul.f32 %v312, %v277
    %v319 = vadd.f32 %v315, %v317
    %v320 = vadd.f32 %v316, %v318
    %s321 = sld [smem:[#allocation13 + $0x1]]
    %v322 = vld [vmem:[#allocation8] sm:$0xff]
    %v323 = vld [vmem:[#allocation8 + $0x8] sm:$0xff]
    %v324 = vld [vmem:[#allocation8 + $0x10] sm:$0xff]
    %v325 = vld [vmem:[#allocation8 + $0x18] sm:$0xff]
    %v326 = vpack.c.bf16 %v323, %v322
    %v327 = vpack.c.bf16 %v325, %v324
    %v328 = vld [vmem:[%s9] sm:$0x1]
    %v330 = vlaneseq
    %v331 = vshrl.u32 %v330, 7
    %v332 = vsub.s32 0, %v331
    %v333 = vrot.slane %v328, %v332
    %v336 = vsel %vm166, %v148, 0
    %v339 = vsel %vm166, %v326, 0
    %v342 = vsel %vm166, %v327, 0
    %344 = vmatprep.subr.bf16.mxu0 0
    %345 = vmatpush1.bf16.xpose.msra.mxu0 %v339
    %346 = vmatprep.subr.bf16.mxu0 0
    %347 = vmatpush1.bf16.xpose.msra.mxu0 %v342
    %348 = vmatprep.subr.bf16.mxu0 0
    %349 = vmatpush1.bf16.xpose.msra.mxu0 0
    %350 = vmatprep.subr.bf16.mxu0 0
    %351 = vmatpush1.bf16.xpose.msra.mxu0 0
    %352 = vmatprep.subr.bf16.mxu0 0
    %353 = vmatpush1.bf16.xpose.msra.mxu0 0
    %354 = vmatprep.subr.bf16.mxu0 0
    %355 = vmatpush1.bf16.xpose.msra.mxu0 0
    %356 = vmatprep.subr.bf16.mxu0 0
    %357 = vmatpush1.bf16.xpose.msra.mxu0 0
    %358 = vmatprep.subr.bf16.mxu0 0
    %359 = vmatpush1.bf16.xpose.msra.mxu0 0
    %360 = vmatprep.subr.bf16.mxu0 0
    %361 = vmatpush1.bf16.xpose.msra.mxu0 0
    %362 = vmatprep.subr.bf16.mxu0 0
    %363 = vmatpush1.bf16.xpose.msra.mxu0 0
    %364 = vmatprep.subr.bf16.mxu0 0
    %365 = vmatpush1.bf16.xpose.msra.mxu0 0
    %366 = vmatprep.subr.bf16.mxu0 0
    %367 = vmatpush1.bf16.xpose.msra.mxu0 0
    %368 = vmatprep.subr.bf16.mxu0 0
    %369 = vmatpush1.bf16.xpose.msra.mxu0 0
    %370 = vmatprep.subr.bf16.mxu0 0
    %371 = vmatpush1.bf16.xpose.msra.mxu0 0
    %372 = vmatprep.subr.bf16.mxu0 0
    %373 = vmatpush1.bf16.xpose.msra.mxu0 0
    %374 = vmatprep.subr.bf16.mxu0 0
    %375 = vmatpush1.bf16.xpose.msra.mxu0 0
    %376 = vmatprep.mubr.bf16.mxu0 0
    %377 = vmatmul.mubr.bf16.gmra.mrb[0].mxu0 %v336
    %v378 = vpop.f32.mrb[0].mxu0
    %v379 = vadd.f32 %v333, %v378
    %v380 = vpop.f32.mrb[0].mxu0
    %v381 = vpop.f32.mrb[0].mxu0
    %v382 = vadd.f32 %v333, %v381
    %v383 = vpop.f32.mrb[0].mxu0
    %384 = vdwg.mxu0
    %v385 = vld [vmem:[#allocation10] sm:$0xff]
    %v386 = vld [vmem:[#allocation10 + $0x8] sm:$0xff]
    %v387 = vld [vmem:[#allocation10 + $0x10] sm:$0xff]
    %v388 = vld [vmem:[#allocation10 + $0x18] sm:$0xff]
    %v389 = vpack.c.bf16 %v386, %v385
    %v390 = vpack.c.bf16 %v388, %v387
    %v391 = vld [vmem:[%s11] sm:$0x1]
    %v393 = vlaneseq
    %v394 = vshrl.u32 %v393, 7
    %v395 = vsub.s32 0, %v394
    %v396 = vrot.slane %v391, %v395
    %v399 = vsel %vm166, %v389, 0
    %v402 = vsel %vm166, %v390, 0
    %404 = vmatprep.subr.bf16.mxu0 0
    %405 = vmatpush1.bf16.xpose.msra.mxu0 %v399
    %406 = vmatprep.subr.bf16.mxu0 0
    %407 = vmatpush1.bf16.xpose.msra.mxu0 %v402
    %408 = vmatprep.subr.bf16.mxu0 0
    %409 = vmatpush1.bf16.xpose.msra.mxu0 0
    %410 = vmatprep.subr.bf16.mxu0 0
    %411 = vmatpush1.bf16.xpose.msra.mxu0 0
    %412 = vmatprep.subr.bf16.mxu0 0
    %413 = vmatpush1.bf16.xpose.msra.mxu0 0
    %414 = vmatprep.subr.bf16.mxu0 0
    %415 = vmatpush1.bf16.xpose.msra.mxu0 0
    %416 = vmatprep.subr.bf16.mxu0 0
    %417 = vmatpush1.bf16.xpose.msra.mxu0 0
    %418 = vmatprep.subr.bf16.mxu0 0
    %419 = vmatpush1.bf16.xpose.msra.mxu0 0
    %420 = vmatprep.subr.bf16.mxu0 0
    %421 = vmatpush1.bf16.xpose.msra.mxu0 0
    %422 = vmatprep.subr.bf16.mxu0 0
    %423 = vmatpush1.bf16.xpose.msra.mxu0 0
    %424 = vmatprep.subr.bf16.mxu0 0
    %425 = vmatpush1.bf16.xpose.msra.mxu0 0
    %426 = vmatprep.subr.bf16.mxu0 0
    %427 = vmatpush1.bf16.xpose.msra.mxu0 0
    %428 = vmatprep.subr.bf16.mxu0 0
    %429 = vmatpush1.bf16.xpose.msra.mxu0 0
    %430 = vmatprep.subr.bf16.mxu0 0
    %431 = vmatpush1.bf16.xpose.msra.mxu0 0
    %432 = vmatprep.subr.bf16.mxu0 0
    %433 = vmatpush1.bf16.xpose.msra.mxu0 0
    %434 = vmatprep.subr.bf16.mxu0 0
    %435 = vmatpush1.bf16.xpose.msra.mxu0 0
    %436 = vmatprep.mubr.bf16.mxu0 0
    %437 = vmatmul.mubr.bf16.gmra.mrb[0].mxu0 %v231
    %v438 = vpop.f32.mrb[0].mxu0
    %v439 = vadd.f32 %v396, %v438
    %v440 = vpop.f32.mrb[0].mxu0
    %v441 = vpop.f32.mrb[0].mxu0
    %v442 = vadd.f32 %v396, %v441
    %v443 = vpop.f32.mrb[0].mxu0
    %444 = vdwg.mxu0
    %v445 = vadd.f32 %v379, %v439
    %v446 = vadd.f32 %v382, %v442
    %v447 = vld [vmem:[#allocation11] sm:$0x1]
    %v449 = vlaneseq
    %v450 = vshrl.u32 %v449, 7
    %v451 = vsub.s32 0, %v450
    %v452 = vrot.slane %v447, %v451
    %v454 = vmul.f32 %v445, %v452
    %v455 = vmul.f32 %v446, %v452
    %v456 = vsel %vm166, %v454, 0.0
    %457 = vadd.xlane.f32.xlu0 %v456
    %v458 = vpop.xlane.xlu0 %457
    %v459 = vsel %vm166, %v455, 0.0
    %460 = vadd.xlane.f32.xlu0 %v459
    %v461 = vpop.xlane.xlu0 %460
    %s462 = smul.f32 %s321, 2.0
    %v463 = vstv %s462
    %v464 = vadd.f32 %v458, %v463
    %v465 = vadd.f32 %v461, %v463
    %v466 = vxor.u32 %v464, 2147483648
    %v467 = vxor.u32 %v465, 2147483648
    %v468 = vmul.f32 %v466, 1.442695
    %v469 = vpow.pop %v468
    %v470 = vmul.f32 %v467, 1.442695
    %v471 = vpow.pop %v470
    %v472 = vadd.f32 %v469, 1.0
    %v473 = vadd.f32 %v471, 1.0
    %v474 = vrcp.pop %v472
    %v475 = vmul.f32 1.0, %v474
    %v476 = vrcp.pop %v473
    %v477 = vmul.f32 1.0, %v476
    %v478 = vsub.f32 1.0, %v475
    %v479 = vsub.f32 1.0, %v477
    %v480 = vmul.f32 %v478, %v379
    %v481 = vmul.f32 %v479, %v382
    %v482 = vmul.f32 %v475, %v439
    %v483 = vmul.f32 %v477, %v442
    %v484 = vadd.f32 %v480, %v482
    %v485 = vadd.f32 %v481, %v483
    %v486 = vmul.f32 %v319, 0.35355338
    %v487 = vmul.f32 %v320, 0.35355338
    %v488 = vpack.c.bf16 %v487, %v486
    %v490 = vunpack.c.l.b16 %v488
    %v491 = vunpack.c.h.b16 %v488
    %v492 = vpack.c.b16 %v490, %v490
    %v493 = vpack.c.b16 %v491, %v491
    %vm496 = vcmask 257024
    %497 = vst.msk [vmem:[%s14] sm:$0xf] %vm496, %v492
    %498 = vst.msk [vmem:[%s14 + $0x4] sm:$0xf] %vm496, %v493
    %v499 = vpack.c.bf16 %v485, %v484
    %v501 = vunpack.c.l.b16 %v499
    %v502 = vunpack.c.h.b16 %v499
    %v503 = vpack.c.b16 %v501, %v501
    %v504 = vpack.c.b16 %v502, %v502
    %507 = vst.msk [vmem:[%s15] sm:$0xf] %vm496, %v503
    %508 = vst.msk [vmem:[%s15 + $0x4] sm:$0xf] %vm496, %v504
    // Predicated region
    $region86: #{multi_head_dual_attention.2} parent=1 // pred_check
      _
    $region87: #{multi_head_dual_attention.2} parent=1 // pred_check_branch
      %510 = sbr.rel (0) target = $region89
    $region88: #{multi_head_dual_attention.2} parent=1 // pred_region
      _
    $region89: #{multi_head_dual_attention.2} parent=1 // pred_fallthru
      _
    // Predicated region
    $region90: #{multi_head_dual_attention.2} parent=1 // pred_check
      _
    $region91: #{multi_head_dual_attention.2} parent=1 // pred_check_branch
      %512 = sbr.rel (0) target = $region93
    $region92: #{multi_head_dual_attention.2} parent=1 // pred_region
      _
    $region93: #{multi_head_dual_attention.2} parent=1 // pred_fallthru
      _
    // Predicated region
    $region94: #{multi_head_dual_attention.2} parent=1 // pred_check
      _
    $region95: #{multi_head_dual_attention.2} parent=1 // pred_check_branch
      %514 = sbr.rel (0) target = $region97
    $region96: #{multi_head_dual_attention.2} parent=1 // pred_region
      _
    $region97: #{multi_head_dual_attention.2} parent=1 // pred_fallthru
      _
    // Predicated region
    $region98: #{multi_head_dual_attention.2} parent=1 // pred_check
      _
    $region99: #{multi_head_dual_attention.2} parent=1 // pred_check_branch
      %516 = sbr.rel (0) target = $region101
    $region100: #{multi_head_dual_attention.2} parent=1 // pred_region
      _
    $region101: #{multi_head_dual_attention.2} parent=1 // pred_fallthru
      _
    %517 = vsyncpa [#allocation3], 1
    %518 = vsyncpa [#allocation6], 1
    %519 = vsyncpa [#allocation9], 1
    %520 = vsyncpa [#allocation12], 1
    %521 = vsyncpa [#allocation4], 1

// kernel: multi_head_dual_attention.3
$region0: #{multi_head_dual_attention.3}
  #allocation0 [shape = 'u32[]', space=smem, size = 0x4, offset = 0x4, fixed_abs, tag = 'smem constant byte address 0x4 - core index']
  #allocation1 [shape = 'u32[144,128]{1,0:T(1,128)}', space=vmem, size = 0x12000, scoped, tag = 'internal scratch']
  %s0 = inlined_call_operand.vmem [shape: bf16[2,8,32], index: 0, kind: input, shape index: {}]
  %s1 = inlined_call_operand.vmem [shape: bf16[2,8,32], index: 1, kind: input, shape index: {}]
  %s2 = inlined_call_operand.vmem [shape: bf16[2,8,8], index: 2, kind: input, shape index: {}]
  %s3 = inlined_call_operand.hbm [shape: f32[2,4,8,8], index: 3, kind: output, shape index: {}]
  %s4 = sld [smem:[#allocation0]]
  $region45: #{multi_head_dual_attention.3} parent=0
    _
  %s6 = ssub.s32 1, %s4
  %s7 = scalar_select 0, %s6, %s4
  $region1: #{multi_head_dual_attention.3} parent=0
    #allocation2 [shape = 'u8[32768]{0}', space=vmem, size = 0x8000, scoped, tag = 'output window, operand 0']
    #allocation3 [shape = 's32[2]{0}', space=sflag, size = 0x8, scoped, tag = 'scoped memory for multi_head_dual_attention.3']
    %8 = vsyncpa [#allocation3], 0
    %s9 = scalar_lea.sflag [#allocation3], 1
    %10 = vsyncpa %s9, 0
    loop: start=0, step=1, limit=4
    $region2: #{multi_head_dual_attention.3} parent=1 // loop_pre_header
      _
    $region3: #{multi_head_dual_attention.3} parent=1 // loop_header
      %s12 = sphi 0, %s16
      %p13 = scmp.ge.s32.totalorder %s12, 4
      %s19 = sphi 0, %s31
      %s20 = sphi 0, %s27
      %s21 = sphi 0, %s19
      %s22 = sphi 0, %s20
      %s23 = sphi 0, %s21
      %s24 = sphi 0, %s22
      %s36 = sphi 0, %s38
      %s39 = sphi 0, %s36
      %s40 = sphi 0, %s39
      %s56 = sphi 0, %s40
      %s62 = sphi 0, %s64
      %s65 = sphi 0, %s62
      %s66 = sphi 0, %s65
      %s82 = sphi 0, %s66
      %s90 = sphi 0, %s92
      %s93 = sphi 0, %s90
      %s94 = sphi 0, %s93
      %s110 = sphi 0, %s94
      %s118 = sphi 0, %s120
      %s121 = sphi 0, %s118
      %s122 = sphi 0, %s121
      %s138 = sphi 0, %s122
    $region4: #{multi_head_dual_attention.3} parent=1 // loop_header_branch
      %15 = sbr.rel (%p13) target = $region8
    $region5: #{multi_head_dual_attention.3} parent=1 // loop_body
      %s17 = ssub.s32 %s12, 1
      %s18 = ssub.s32 %s12, 2
      %s25 = sadd.s32 1, %s20
      %p26 = scmp.ge.s32.totalorder %s25, 1
      %s27 = scalar_select %p26, 0, %s25
      %s28 = sadd.s32 1, %s19
      %s29 = scalar_select %p26, %s28, %s19
      %p30 = scmp.ge.s32.totalorder %s29, 2
      %s31 = scalar_select %p30, 0, %s29
      %s32 = ssub.s32 %s19, %s31
      %s33 = ssub.s32 %s20, %s27
      %s34 = sor.u32 %s32, %s33
      %p35 = scmp.eq.s32.totalorder %s34, 0
      %s37 = sadd.s32 %s36, 1
      %s38 = scalar_select %p35, %s36, %s37
      %p41 = pneg %p35
      %p42 = scmp.eq.s32.totalorder %s12, 1
      %p43 = por %p41, %p42
      %p44 = scmp.ne.s32.totalorder %s36, %s39
      %p45 = scmp.eq.s32.totalorder %s12, 0
      %p46 = por %p44, %p45
      %p47 = scmp.ne.s32.totalorder %s36, %s39
      %p48 = scmp.eq.s32.totalorder %s17, 1
      %p49 = por %p47, %p48
      %p50 = scmp.ne.s32.totalorder %s39, %s40
      %p51 = scmp.eq.s32.totalorder %s17, 0
      %p52 = por %p50, %p51
      %p53 = scmp.ne.s32.totalorder %s39, %s40
      %p54 = scmp.eq.s32.totalorder %s18, 1
      %p55 = por %p53, %p54
      %p57 = scmp.ne.s32.totalorder %s40, %s56
      %p58 = scmp.eq.s32.totalorder %s18, 0
      %p59 = por %p57, %p58
      %s60 = ssub.s32 %s19, %s31
      %p61 = scmp.eq.s32.totalorder %s60, 0
      %s63 = sadd.s32 %s62, 1
      %s64 = scalar_select %p61, %s62, %s63
      %p67 = pneg %p61
      %p68 = scmp.eq.s32.totalorder %s12, 1
      %p69 = por %p67, %p68
      %p70 = scmp.ne.s32.totalorder %s62, %s65
      %p71 = scmp.eq.s32.totalorder %s12, 0
      %p72 = por %p70, %p71
      %p73 = scmp.ne.s32.totalorder %s62, %s65
      %p74 = scmp.eq.s32.totalorder %s17, 1
      %p75 = por %p73, %p74
      %p76 = scmp.ne.s32.totalorder %s65, %s66
      %p77 = scmp.eq.s32.totalorder %s17, 0
      %p78 = por %p76, %p77
      %p79 = scmp.ne.s32.totalorder %s65, %s66
      %p80 = scmp.eq.s32.totalorder %s18, 1
      %p81 = por %p79, %p80
      %p83 = scmp.ne.s32.totalorder %s66, %s82
      %p84 = scmp.eq.s32.totalorder %s18, 0
      %p85 = por %p83, %p84
      %s86 = ssub.s32 %s19, %s31
      %s87 = ssub.s32 %s20, %s27
      %s88 = sor.u32 %s86, %s87
      %p89 = scmp.eq.s32.totalorder %s88, 0
      %s91 = sadd.s32 %s90, 1
      %s92 = scalar_select %p89, %s90, %s91
      %p95 = pneg %p89
      %p96 = scmp.eq.s32.totalorder %s12, 1
      %p97 = por %p95, %p96
      %p98 = scmp.ne.s32.totalorder %s90, %s93
      %p99 = scmp.eq.s32.totalorder %s12, 0
      %p100 = por %p98, %p99
      %p101 = scmp.ne.s32.totalorder %s90, %s93
      %p102 = scmp.eq.s32.totalorder %s17, 1
      %p103 = por %p101, %p102
      %p104 = scmp.ne.s32.totalorder %s93, %s94
      %p105 = scmp.eq.s32.totalorder %s17, 0
      %p106 = por %p104, %p105
      %p107 = scmp.ne.s32.totalorder %s93, %s94
      %p108 = scmp.eq.s32.totalorder %s18, 1
      %p109 = por %p107, %p108
      %p111 = scmp.ne.s32.totalorder %s94, %s110
      %p112 = scmp.eq.s32.totalorder %s18, 0
      %p113 = por %p111, %p112
      %s114 = ssub.s32 %s19, %s31
      %s115 = ssub.s32 %s20, %s27
      %s116 = sor.u32 %s114, %s115
      %p117 = scmp.eq.s32.totalorder %s116, 0
      %s119 = sadd.s32 %s118, 1
      %s120 = scalar_select %p117, %s118, %s119
      %p123 = pneg %p117
      %p124 = scmp.eq.s32.totalorder %s12, 1
      %p125 = por %p123, %p124
      %p126 = scmp.ne.s32.totalorder %s118, %s121
      %p127 = scmp.eq.s32.totalorder %s12, 0
      %p128 = por %p126, %p127
      %p129 = scmp.ne.s32.totalorder %s118, %s121
      %p130 = scmp.eq.s32.totalorder %s17, 1
      %p131 = por %p129, %p130
      %p132 = scmp.ne.s32.totalorder %s121, %s122
      %p133 = scmp.eq.s32.totalorder %s17, 0
      %p134 = por %p132, %p133
      %p135 = scmp.ne.s32.totalorder %s121, %s122
      %p136 = scmp.eq.s32.totalorder %s18, 1
      %p137 = por %p135, %p136
      %p139 = scmp.ne.s32.totalorder %s122, %s138
      %p140 = scmp.eq.s32.totalorder %s18, 0
      %p141 = por %p139, %p140
      %p142 = scmp.le.s32.totalorder 1, %s12
      %p143 = scmp.lt.s32.totalorder %s12, 3
      %p144 = pnand %p142, %p143
      %p145 = pneg %p144
      // Predicated region
      $region9: #{multi_head_dual_attention.3} parent=5 // pred_check
        _
      $region10: #{multi_head_dual_attention.3} parent=5 // pred_check_branch
        %147 = sbr.rel (%p144) target = $region12
      $region11: #{multi_head_dual_attention.3} parent=5 // pred_region
        %s148 = ssub.s32 %s12, 1
      $region12: #{multi_head_dual_attention.3} parent=5 // pred_fallthru
        _
      %p149 = scmp.lt.s32.totalorder %s12, 2
      // Predicated region
      $region13: #{multi_head_dual_attention.3} parent=5 // pred_check
        %p150 = pneg %p149
      $region14: #{multi_head_dual_attention.3} parent=5 // pred_check_branch
        %152 = sbr.rel (%p150) target = $region16
      $region15: #{multi_head_dual_attention.3} parent=5 // pred_region
        // Predicated region
        $region17: #{multi_head_dual_attention.3} parent=15 // pred_check
          %p153 = pneg %p46
        $region18: #{multi_head_dual_attention.3} parent=15 // pred_check_branch
          %155 = sbr.rel (%p153) target = $region20
        $region19: #{multi_head_dual_attention.3} parent=15 // pred_region
          %p156 = scmp.lt.s32.totalorder %s19, 1
          %s157 = scalar_select %p156, %s19, 1
          %p158 = scmp.lt.s32.totalorder %s20, 0
          %s159 = scalar_select %p158, %s20, 0
          %s160 = sadd.s32 %s159, %s157
          %s161 = smul.addr %s160, 4
          %s162 = scalar_lea.vmem %s0, %s161
        $region20: #{multi_head_dual_attention.3} parent=15 // pred_fallthru
          _
        // Predicated region
        $region21: #{multi_head_dual_attention.3} parent=15 // pred_check
          %p163 = pneg %p72
        $region22: #{multi_head_dual_attention.3} parent=15 // pred_check_branch
          %165 = sbr.rel (%p163) target = $region24
        $region23: #{multi_head_dual_attention.3} parent=15 // pred_region
          %p166 = scmp.lt.s32.totalorder %s19, 1
          %s167 = scalar_select %p166, %s19, 1
          %s168 = smul.addr %s167, 4
          %s169 = scalar_lea.vmem %s1, %s168
        $region24: #{multi_head_dual_attention.3} parent=15 // pred_fallthru
          _
        // Predicated region
        $region25: #{multi_head_dual_attention.3} parent=15 // pred_check
          %p170 = pneg %p100
        $region26: #{multi_head_dual_attention.3} parent=15 // pred_check_branch
          %172 = sbr.rel (%p170) target = $region28
        $region27: #{multi_head_dual_attention.3} parent=15 // pred_region
          %p173 = scmp.lt.s32.totalorder %s19, 1
          %s174 = scalar_select %p173, %s19, 1
          %p175 = scmp.lt.s32.totalorder %s20, 0
          %s176 = scalar_select %p175, %s20, 0
          %s177 = sadd.s32 %s176, %s174
          %s178 = smul.addr %s177, 4
          %s179 = scalar_lea.vmem %s2, %s178
        $region28: #{multi_head_dual_attention.3} parent=15 // pred_fallthru
          _
      $region16: #{multi_head_dual_attention.3} parent=5 // pred_fallthru
        _
      %p180 = scmp.le.s32.totalorder 1, %s12
      %p181 = scmp.lt.s32.totalorder %s12, 3
      %p182 = pnand %p180, %p181
      %p183 = pneg %p182
      // Predicated region
      $region29: #{multi_head_dual_attention.3} parent=5 // pred_check
        _
      $region30: #{multi_head_dual_attention.3} parent=5 // pred_check_branch
        %185 = sbr.rel (%p182) target = $region32
      $region31: #{multi_head_dual_attention.3} parent=5 // pred_region
        %s186 = ssub.s32 %s12, 1
        %p187 = scmp.lt.s32.totalorder %s21, 1
        %s188 = scalar_select %p187, %s21, 1
        %p189 = scmp.lt.s32.totalorder %s22, 0
        %s190 = scalar_select %p189, %s22, 0
        %s191 = sadd.s32 %s190, %s188
        %s192 = smul.addr %s191, 4
        %s193 = scalar_lea.vmem %s0, %s192
        %p194 = pneg %p52
        %p195 = pneg %p49
        %p196 = scmp.lt.s32.totalorder %s21, 1
        %s197 = scalar_select %p196, %s21, 1
        %s198 = smul.addr %s197, 4
        %s199 = scalar_lea.vmem %s1, %s198
        %p200 = pneg %p78
        %p201 = pneg %p75
        %p202 = scmp.lt.s32.totalorder %s21, 1
        %s203 = scalar_select %p202, %s21, 1
        %p204 = scmp.lt.s32.totalorder %s22, 0
        %s205 = scalar_select %p204, %s22, 0
        %s206 = sadd.s32 %s205, %s203
        %s207 = smul.addr %s206, 4
        %s208 = scalar_lea.vmem %s2, %s207
        %p209 = pneg %p106
        %p210 = pneg %p103
        %p211 = pneg %p134
        %p212 = pneg %p131
        %s213 = sand.u32 %s121, 1
        %s214 = scalar_lea.sflag [#allocation3], %s213
        %s215 = sand.u32 %s121, 1
        %s216 = smul.addr %s215, 32
        %s217 = scalar_lea.vmem [#allocation2], %s216
        %p218 = scmp.lt.s32.totalorder %s21, 1
        %s219 = scalar_select %p218, %s21, 1
        %p220 = scmp.lt.s32.totalorder %s22, 0
        %s221 = scalar_select %p220, %s22, 0
        %s222 = sadd.s32 %s221, %s219
        %s223 = smul.addr %s222, 4
        %s224 = scalar_lea.vmem %s0, %s223
        %p225 = scmp.lt.s32.totalorder %s21, 1
        %s226 = scalar_select %p225, %s21, 1
        %s227 = smul.addr %s226, 4
        %s228 = scalar_lea.vmem %s1, %s227
        %p229 = scmp.lt.s32.totalorder %s21, 1
        %s230 = scalar_select %p229, %s21, 1
        %p231 = scmp.lt.s32.totalorder %s22, 0
        %s232 = scalar_select %p231, %s22, 0
        %s233 = sadd.s32 %s232, %s230
        %s234 = smul.addr %s233, 4
        %s235 = scalar_lea.vmem %s2, %s234
        %v239 = vld [vmem:[%s224] sm:$0xf]
        %v240 = vld [vmem:[%s228] sm:$0xf]
        %v241 = vld [vmem:[%s235] sm:$0xf]
        %vm242 = vcmp.ne.bf16.partialorder %v241, 0
        %vm243 = vcmask 64512
        %v245 = vsel %vm243, %v239, 0
        %v248 = vsel %vm243, %v240, 0
        %250 = vmatprep.subr.bf16.mxu0 0
        %251 = vmatpush1.bf16.xpose.msra.mxu0 %v248
        %252 = vmatprep.subr.bf16.mxu0 0
        %253 = vmatpush1.bf16.xpose.msra.mxu0 0
        %254 = vmatprep.subr.bf16.mxu0 0
        %255 = vmatpush1.bf16.xpose.msra.mxu0 0
        %256 = vmatprep.subr.bf16.mxu0 0
        %257 = vmatpush1.bf16.xpose.msra.mxu0 0
        %258 = vmatprep.subr.bf16.mxu0 0
        %259 = vmatpush1.bf16.xpose.msra.mxu0 0
        %260 = vmatprep.subr.bf16.mxu0 0
        %261 = vmatpush1.bf16.xpose.msra.mxu0 0
        %262 = vmatprep.subr.bf16.mxu0 0
        %263 = vmatpush1.bf16.xpose.msra.mxu0 0
        %264 = vmatprep.subr.bf16.mxu0 0
        %265 = vmatpush1.bf16.xpose.msra.mxu0 0
        %266 = vmatprep.subr.bf16.mxu0 0
        %267 = vmatpush1.bf16.xpose.msra.mxu0 0
        %268 = vmatprep.subr.bf16.mxu0 0
        %269 = vmatpush1.bf16.xpose.msra.mxu0 0
        %270 = vmatprep.subr.bf16.mxu0 0
        %271 = vmatpush1.bf16.xpose.msra.mxu0 0
        %272 = vmatprep.subr.bf16.mxu0 0
        %273 = vmatpush1.bf16.xpose.msra.mxu0 0
        %274 = vmatprep.subr.bf16.mxu0 0
        %275 = vmatpush1.bf16.xpose.msra.mxu0 0
        %276 = vmatprep.subr.bf16.mxu0 0
        %277 = vmatpush1.bf16.xpose.msra.mxu0 0
        %278 = vmatprep.subr.bf16.mxu0 0
        %279 = vmatpush1.bf16.xpose.msra.mxu0 0
        %280 = vmatprep.subr.bf16.mxu0 0
        %281 = vmatpush1.bf16.xpose.msra.mxu0 0
        %282 = vmatprep.mubr.bf16.mxu0 0
        %283 = vmatmul.mubr.bf16.gmra.mrb[0].mxu0 %v245
        %v284 = vpop.f32.mrb[0].mxu0
        %v285 = vadd.f32 0.0, %v284
        %v286 = vpop.f32.mrb[0].mxu0
        %v287 = vpop.f32.mrb[0].mxu0
        %v288 = vpop.f32.mrb[0].mxu0
        %289 = vdwg.mxu0
        %v290 = vsel %vm242, 65537, 0
        %v291 = vunpack.c.l.b16 %v290
        %vm292 = vcmp.ne.s32.totalorder %v291, 0
        %v293 = vsel %vm292, -10000.0, %v285
        %v294 = vsel %vm243, %v293, -inf
        %295 = vmax.xlane.f32.xlu0 %v294
        %v296 = vpop.xlane.xlu0 %295
        %v297 = vsub.f32 %v293, %v296
        %v298 = vmul.f32 %v297, 1.442695
        %v299 = vpow.pop %v298
        %v300 = vsel %vm243, %v299, 0.0
        %301 = vadd.xlane.f32.xlu0 %v300
        %v302 = vpop.xlane.xlu0 %301
        %v303 = vrcp.pop %v302
        %v304 = vmul.f32 %v299, %v303
        %305 = vst.msk [vmem:[%s217] sm:$0xff] %vm243, %v304
        %v307 = vunpack.c.l.b16 %v239
        %v308 = vpack.c.b16 %v307, %v307
        %309 = vrot.lane.b32.xlu0 %v308, 120
        %v310 = vpop.permute.xlu0 %309
        %v312 = vunpack.c.l.b16 %v240
        %v313 = vpack.c.b16 %v312, %v312
        %314 = vrot.lane.b32.xlu0 %v313, 120
        %v315 = vpop.permute.xlu0 %314
        %v317 = vsel %vm243, %v310, 0
        %v320 = vsel %vm243, %v315, 0
        %322 = vmatprep.subr.bf16.mxu0 0
        %323 = vmatpush1.bf16.xpose.msra.mxu0 %v320
        %324 = vmatprep.subr.bf16.mxu0 0
        %325 = vmatpush1.bf16.xpose.msra.mxu0 0
        %326 = vmatprep.subr.bf16.mxu0 0
        %327 = vmatpush1.bf16.xpose.msra.mxu0 0
        %328 = vmatprep.subr.bf16.mxu0 0
        %329 = vmatpush1.bf16.xpose.msra.mxu0 0
        %330 = vmatprep.subr.bf16.mxu0 0
        %331 = vmatpush1.bf16.xpose.msra.mxu0 0
        %332 = vmatprep.subr.bf16.mxu0 0
        %333 = vmatpush1.bf16.xpose.msra.mxu0 0
        %334 = vmatprep.subr.bf16.mxu0 0
        %335 = vmatpush1.bf16.xpose.msra.mxu0 0
        %336 = vmatprep.subr.bf16.mxu0 0
        %337 = vmatpush1.bf16.xpose.msra.mxu0 0
        %338 = vmatprep.subr.bf16.mxu0 0
        %339 = vmatpush1.bf16.xpose.msra.mxu0 0
        %340 = vmatprep.subr.bf16.mxu0 0
        %341 = vmatpush1.bf16.xpose.msra.mxu0 0
        %342 = vmatprep.subr.bf16.mxu0 0
        %343 = vmatpush1.bf16.xpose.msra.mxu0 0
        %344 = vmatprep.subr.bf16.mxu0 0
        %345 = vmatpush1.bf16.xpose.msra.mxu0 0
        %346 = vmatprep.subr.bf16.mxu0 0
        %347 = vmatpush1.bf16.xpose.msra.mxu0 0
        %348 = vmatprep.subr.bf16.mxu0 0
        %349 = vmatpush1.bf16.xpose.msra.mxu0 0
        %350 = vmatprep.subr.bf16.mxu0 0
        %351 = vmatpush1.bf16.xpose.msra.mxu0 0
        %352 = vmatprep.subr.bf16.mxu0 0
        %353 = vmatpush1.bf16.xpose.msra.mxu0 0
        %354 = vmatprep.mubr.bf16.mxu0 0
        %355 = vmatmul.mubr.bf16.gmra.mrb[0].mxu0 %v317
        %v356 = vpop.f32.mrb[0].mxu0
        %v357 = vadd.f32 0.0, %v356
        %v358 = vpop.f32.mrb[0].mxu0
        %v359 = vpop.f32.mrb[0].mxu0
        %v360 = vpop.f32.mrb[0].mxu0
        %361 = vdwg.mxu0
        %v362 = vsel %vm292, -10000.0, %v357
        %v363 = vsel %vm243, %v362, -inf
        %364 = vmax.xlane.f32.xlu0 %v363
        %v365 = vpop.xlane.xlu0 %364
        %v366 = vsub.f32 %v362, %v365
        %v367 = vmul.f32 %v366, 1.442695
        %v368 = vpow.pop %v367
        %v369 = vsel %vm243, %v368, 0.0
        %370 = vadd.xlane.f32.xlu0 %v369
        %v371 = vpop.xlane.xlu0 %370
        %v372 = vrcp.pop %v371
        %v373 = vmul.f32 %v368, %v372
        %s374 = scalar_lea.vmem %s217, 8 [#allocation2]
        %375 = vst.msk [vmem:[%s374] sm:$0xff] %vm243, %v373
        %376 = vrot.lane.b32.xlu0 %v308, 112
        %v377 = vpop.permute.xlu0 %376
        %378 = vrot.lane.b32.xlu0 %v313, 112
        %v379 = vpop.permute.xlu0 %378
        %v381 = vsel %vm243, %v377, 0
        %v384 = vsel %vm243, %v379, 0
        %386 = vmatprep.subr.bf16.mxu0 0
        %387 = vmatpush1.bf16.xpose.msra.mxu0 %v384
        %388 = vmatprep.subr.bf16.mxu0 0
        %389 = vmatpush1.bf16.xpose.msra.mxu0 0
        %390 = vmatprep.subr.bf16.mxu0 0
        %391 = vmatpush1.bf16.xpose.msra.mxu0 0
        %392 = vmatprep.subr.bf16.mxu0 0
        %393 = vmatpush1.bf16.xpose.msra.mxu0 0
        %394 = vmatprep.subr.bf16.mxu0 0
        %395 = vmatpush1.bf16.xpose.msra.mxu0 0
        %396 = vmatprep.subr.bf16.mxu0 0
        %397 = vmatpush1.bf16.xpose.msra.mxu0 0
        %398 = vmatprep.subr.bf16.mxu0 0
        %399 = vmatpush1.bf16.xpose.msra.mxu0 0
        %400 = vmatprep.subr.bf16.mxu0 0
        %401 = vmatpush1.bf16.xpose.msra.mxu0 0
        %402 = vmatprep.subr.bf16.mxu0 0
        %403 = vmatpush1.bf16.xpose.msra.mxu0 0
        %404 = vmatprep.subr.bf16.mxu0 0
        %405 = vmatpush1.bf16.xpose.msra.mxu0 0
        %406 = vmatprep.subr.bf16.mxu0 0
        %407 = vmatpush1.bf16.xpose.msra.mxu0 0
        %408 = vmatprep.subr.bf16.mxu0 0
        %409 = vmatpush1.bf16.xpose.msra.mxu0 0
        %410 = vmatprep.subr.bf16.mxu0 0
        %411 = vmatpush1.bf16.xpose.msra.mxu0 0
        %412 = vmatprep.subr.bf16.mxu0 0
        %413 = vmatpush1.bf16.xpose.msra.mxu0 0
        %414 = vmatprep.subr.bf16.mxu0 0
        %415 = vmatpush1.bf16.xpose.msra.mxu0 0
        %416 = vmatprep.subr.bf16.mxu0 0
        %417 = vmatpush1.bf16.xpose.msra.mxu0 0
        %418 = vmatprep.mubr.bf16.mxu0 0
        %419 = vmatmul.mubr.bf16.gmra.mrb[0].mxu0 %v381
        %v420 = vpop.f32.mrb[0].mxu0
        %v421 = vadd.f32 0.0, %v420
        %v422 = vpop.f32.mrb[0].mxu0
        %v423 = vpop.f32.mrb[0].mxu0
        %v424 = vpop.f32.mrb[0].mxu0
        %425 = vdwg.mxu0
        %v426 = vsel %vm292, -10000.0, %v421
        %v427 = vsel %vm243, %v426, -inf
        %428 = vmax.xlane.f32.xlu0 %v427
        %v429 = vpop.xlane.xlu0 %428
        %v430 = vsub.f32 %v426, %v429
        %v431 = vmul.f32 %v430, 1.442695
        %v432 = vpow.pop %v431
        %v433 = vsel %vm243, %v432, 0.0
        %434 = vadd.xlane.f32.xlu0 %v433
        %v435 = vpop.xlane.xlu0 %434
        %v436 = vrcp.pop %v435
        %v437 = vmul.f32 %v432, %v436
        %s438 = scalar_lea.vmem %s217, 16 [#allocation2]
        %439 = vst.msk [vmem:[%s438] sm:$0xff] %vm243, %v437
        %440 = vrot.lane.b32.xlu0 %v308, 104
        %v441 = vpop.permute.xlu0 %440
        %442 = vrot.lane.b32.xlu0 %v313, 104
        %v443 = vpop.permute.xlu0 %442
        %v445 = vsel %vm243, %v441, 0
        %v448 = vsel %vm243, %v443, 0
        %450 = vmatprep.subr.bf16.mxu0 0
        %451 = vmatpush1.bf16.xpose.msra.mxu0 %v448
        %452 = vmatprep.subr.bf16.mxu0 0
        %453 = vmatpush1.bf16.xpose.msra.mxu0 0
        %454 = vmatprep.subr.bf16.mxu0 0
        %455 = vmatpush1.bf16.xpose.msra.mxu0 0
        %456 = vmatprep.subr.bf16.mxu0 0
        %457 = vmatpush1.bf16.xpose.msra.mxu0 0
        %458 = vmatprep.subr.bf16.mxu0 0
        %459 = vmatpush1.bf16.xpose.msra.mxu0 0
        %460 = vmatprep.subr.bf16.mxu0 0
        %461 = vmatpush1.bf16.xpose.msra.mxu0 0
        %462 = vmatprep.subr.bf16.mxu0 0
        %463 = vmatpush1.bf16.xpose.msra.mxu0 0
        %464 = vmatprep.subr.bf16.mxu0 0
        %465 = vmatpush1.bf16.xpose.msra.mxu0 0
        %466 = vmatprep.subr.bf16.mxu0 0
        %467 = vmatpush1.bf16.xpose.msra.mxu0 0
        %468 = vmatprep.subr.bf16.mxu0 0
        %469 = vmatpush1.bf16.xpose.msra.mxu0 0
        %470 = vmatprep.subr.bf16.mxu0 0
        %471 = vmatpush1.bf16.xpose.msra.mxu0 0
        %472 = vmatprep.subr.bf16.mxu0 0
        %473 = vmatpush1.bf16.xpose.msra.mxu0 0
        %474 = vmatprep.subr.bf16.mxu0 0
        %475 = vmatpush1.bf16.xpose.msra.mxu0 0
        %476 = vmatprep.subr.bf16.mxu0 0
        %477 = vmatpush1.bf16.xpose.msra.mxu0 0
        %478 = vmatprep.subr.bf16.mxu0 0
        %479 = vmatpush1.bf16.xpose.msra.mxu0 0
        %480 = vmatprep.subr.bf16.mxu0 0
        %481 = vmatpush1.bf16.xpose.msra.mxu0 0
        %482 = vmatprep.mubr.bf16.mxu0 0
        %483 = vmatmul.mubr.bf16.gmra.mrb[0].mxu0 %v445
        %v484 = vpop.f32.mrb[0].mxu0
        %v485 = vadd.f32 0.0, %v484
        %v486 = vpop.f32.mrb[0].mxu0
        %v487 = vpop.f32.mrb[0].mxu0
        %v488 = vpop.f32.mrb[0].mxu0
        %489 = vdwg.mxu0
        %v490 = vsel %vm292, -10000.0, %v485
        %v491 = vsel %vm243, %v490, -inf
        %492 = vmax.xlane.f32.xlu0 %v491
        %v493 = vpop.xlane.xlu0 %492
        %v494 = vsub.f32 %v490, %v493
        %v495 = vmul.f32 %v494, 1.442695
        %v496 = vpow.pop %v495
        %v497 = vsel %vm243, %v496, 0.0
        %498 = vadd.xlane.f32.xlu0 %v497
        %v499 = vpop.xlane.xlu0 %498
        %v500 = vrcp.pop %v499
        %v501 = vmul.f32 %v496, %v500
        %s502 = scalar_lea.vmem %s217, 24 [#allocation2]
        %503 = vst.msk [vmem:[%s502] sm:$0xff] %vm243, %v501
        %s504 = sand.u32 %s121, 1
        %s505 = scalar_lea.sflag [#allocation3], %s504
        %s506 = sand.u32 %s121, 1
        %s507 = smul.addr %s506, 32
        %s508 = scalar_lea.vmem [#allocation2], %s507
        // Predicated region
        $region33: #{multi_head_dual_attention.3} parent=31 // pred_check
          %p509 = pneg %p131
        $region34: #{multi_head_dual_attention.3} parent=31 // pred_check_branch
          %511 = sbr.rel (%p509) target = $region36
        $region35: #{multi_head_dual_attention.3} parent=31 // pred_region
          %s513 = ssub.s32 512, 512
          %514 = vsyncadd %s505, %s513
          %s515 = smul.addr %s21, 4
          %s516 = sadd.s32 %s22, %s515
          %s517 = smul.addr %s516, 128
          %s518 = scalar_lea.hbm %s3, %s517
          %s519 = sshll.u32 %s508, 4
          %s520 = int_to_ptr.vmem [resolvable:$true] %s519
          %525 = dma.vmem_to_hbm [thread:$0]  %s520, 512, %s518, %s505, 128, 128, 8
        $region36: #{multi_head_dual_attention.3} parent=31 // pred_fallthru
          _
      $region32: #{multi_head_dual_attention.3} parent=5 // pred_fallthru
        _
      %p526 = scmp.le.s32.totalorder 2, %s12
      // Predicated region
      $region37: #{multi_head_dual_attention.3} parent=5 // pred_check
        %p527 = pneg %p526
      $region38: #{multi_head_dual_attention.3} parent=5 // pred_check_branch
        %529 = sbr.rel (%p527) target = $region40
      $region39: #{multi_head_dual_attention.3} parent=5 // pred_region
        %s530 = ssub.s32 %s12, 2
        // Predicated region
        $region41: #{multi_head_dual_attention.3} parent=39 // pred_check
          %p531 = pneg %p137
        $region42: #{multi_head_dual_attention.3} parent=39 // pred_check_branch
          %533 = sbr.rel (%p531) target = $region44
        $region43: #{multi_head_dual_attention.3} parent=39 // pred_region
          %s534 = sand.u32 %s122, 1
          %s535 = scalar_lea.sflag [#allocation3], %s534
          %s536 = sand.u32 %s122, 1
          %s537 = smul.addr %s536, 32
          %s538 = scalar_lea.vmem [#allocation2], %s537
          %539 = dma.done %s535, 512
        $region44: #{multi_head_dual_attention.3} parent=39 // pred_fallthru
          _
      $region40: #{multi_head_dual_attention.3} parent=5 // pred_fallthru
        _
    $region6: #{multi_head_dual_attention.3} parent=1 // loop_footer
      %s16 = sadd.s32 1, %s12
    $region7: #{multi_head_dual_attention.3} parent=1 // loop_footer_branch
      %11 = sbr.rel target = $region3
    $region8: #{multi_head_dual_attention.3} parent=1 // loop_exit
      _
    %540 = vsyncpa [#allocation3], 1
    %s541 = scalar_lea.sflag [#allocation3], 1
    %542 = vsyncpa %s541, 1

</llo_original>
